<compile_context>
chip_gen: v7x
topology: tpu7x:2x2x1
jax: 0.10.0
libtpu: 0.0.40
codegen_flags: <defaults>
</compile_context>

<pallas_src>
import functools
import math

import jax
import jax.numpy as jnp
from jax import lax
from jax.experimental import pallas as pl
from jax.experimental.pallas import tpu as pltpu


def _round_up(x, m):
    return ((x + m - 1) // m) * m


def _default_exp_dtype():
    """bf16 exp on v6e/v7x (bf16 EUP); f32 elsewhere (v5e/v4 have no bf16 EUP)."""
    try:
        kind = jax.devices()[0].device_kind.lower()
    except Exception:  # pragma: no cover
        return jnp.float32
    if "v6" in kind or "v7" in kind:
        return jnp.bfloat16
    return jnp.float32


def _pad_lanes(a, width):
    """Pad the last dim of `a` with zeros up to `width` (lane-dense store)."""
    n, f = a.shape
    if f == width:
        return a
    return jnp.concatenate([a, jnp.zeros((n, width - f), a.dtype)], axis=-1)


# ------------------------------------------------------------------
# Shared in-kernel body: one GNNLayer.forward (all heads)
# ------------------------------------------------------------------
def _gnn_layer_body(x, adj_bf, w_cat_bf, *, n_head, f_out, active, exp_dtype):
    """x: (N, F_in) f32, adj_bf: (N, N) bf16, w_cat_bf: (2*H*F_out, F_in) bf16
    -> (N, F_out) f32."""
    n = x.shape[0]
    nt = (((1,), (1,)), ((), ()))                  # contract last axes: y = a @ b.T
    inv_sqrt_d = 1.0 / math.sqrt(float(f_out))

    # One fused projection for every head's w1 AND w2: (N, 2*H*F_out).
    proj = jnp.tanh(
        lax.dot_general(x.astype(jnp.bfloat16), w_cat_bf, nt,
                        preferred_element_type=jnp.float32))
    proj_bf = proj.astype(jnp.bfloat16)            # single hoisted bf16 cast
    ones_col = jnp.ones((n, 1), jnp.bfloat16)

    s = jnp.zeros((n, f_out), jnp.float32)
    for h in range(n_head):                        # static loop (H <= 2 here)
        sf_bf = proj_bf[:, h * f_out:(h + 1) * f_out]                        # tanh(x@w1.T)
        sf2_bf = proj_bf[:, (n_head + h) * f_out:(n_head + h + 1) * f_out]   # tanh(x@w2.T)

        logits = lax.dot_general(sf2_bf, sf_bf, nt,
                                 preferred_element_type=jnp.float32) * inv_sqrt_d
        # |logits| <= sqrt(f_out) because both projections are tanh-bounded,
        # so exp cannot overflow (even in bf16).
        e = jnp.exp(logits.astype(exp_dtype)).astype(jnp.bfloat16) * adj_bf   # (N, N) bf16

        if active:
            sfa_bf = jnp.tanh(proj[:, h * f_out:(h + 1) * f_out]).astype(jnp.bfloat16)
        else:
            sfa_bf = sf_bf

        # Ones-column trick: e @ [sfa | 1] gives numerator AND per-row sums of e
        # on the MXU; the remaining reduction is only O(N).
        sfa_aug = jnp.concatenate([sfa_bf, ones_col], axis=-1)               # (N, F+1)
        num_aug = jnp.dot(e, sfa_aug, preferred_element_type=jnp.float32)    # (N, F+1)

        total = jnp.sum(num_aug[:, f_out:], keepdims=True)                   # (1,1) = sum(e)
        # Semantic deviation vs reference: an all-zero adjacency gives NaN/Inf in
        # PyTorch; we clamp (no-op for any adjacency with self loops).
        total = jnp.maximum(total, 1e-30)

        s = s + num_aug[:, :f_out] * pl.reciprocal(total, approx=True)

    # adj distributes over the head sum: ONE (N,N)@(N,F) matmul per layer,
    # with the single 1/n_head scale folded in afterwards.
    out = jnp.dot(adj_bf, s.astype(jnp.bfloat16), preferred_element_type=jnp.float32)
    return out * (1.0 / float(n_head))


# ------------------------------------------------------------------
# Pallas kernels
# ------------------------------------------------------------------
def _gnn_layer_kernel(x_ref, adj_ref, w_ref, out_ref, *, n_head, f_out, active,
                      exp_dtype):
    """Standalone GNNLayer.forward (single pallas_call, heads collapsed)."""
    out = _gnn_layer_body(x_ref[...], adj_ref[...], w_ref[...],
                          n_head=n_head, f_out=f_out, active=active,
                          exp_dtype=exp_dtype)
    out_ref[...] = _pad_lanes(out, out_ref.shape[-1])        # lane-dense store


def _igae_fused_kernel(x_ref, adj_ref, w1_ref, w2_ref, w3_ref,
                       z_ref, zadj_ref, *, heads, f_outs, exp_dtype):
    """Full encoder fused: 3 GNN layers + sigmoid(z @ z.T) in one kernel."""
    adj_bf = adj_ref[...]                                     # bf16, single copy

    z = _gnn_layer_body(x_ref[...], adj_bf, w1_ref[...],
                        n_head=heads[0], f_out=f_outs[0], active=True,
                        exp_dtype=exp_dtype)
    z = _gnn_layer_body(z, adj_bf, w2_ref[...],
                        n_head=heads[1], f_out=f_outs[1], active=True,
                        exp_dtype=exp_dtype)
    z = _gnn_layer_body(z, adj_bf, w3_ref[...],
                        n_head=heads[2], f_out=f_outs[2], active=False,
                        exp_dtype=exp_dtype)

    z_ref[...] = _pad_lanes(z, z_ref.shape[-1])               # lane-dense store

    zb = z.astype(jnp.bfloat16)
    nt = (((1,), (1,)), ((), ()))
    sim = lax.dot_general(zb, zb, nt, preferred_element_type=jnp.float32)
    zadj_ref[...] = jax.nn.sigmoid(sim)


# ------------------------------------------------------------------
# Wrappers
# ------------------------------------------------------------------
_VMEM_LIMIT = 32 * 1024 * 1024   # safe on v5e/v6e (128 MiB phys) and v7x (64 MiB)


def _stack_head_weights(w1s, w2s):
    """(H, F_out, F_in) x2 -> (2*H*F_out, F_in) bf16: rows [0, H*F_out) are the
    w1 heads, rows [H*F_out, 2*H*F_out) are the w2 heads."""
    h, f_out, f_in = w1s.shape
    return jnp.concatenate([w1s.reshape(h * f_out, f_in),
                            w2s.reshape(h * f_out, f_in)],
                           axis=0).astype(jnp.bfloat16)


def gnn_layer(x, adj, w1s, w2s, *, active: bool):
    """GNNLayer.forward.  x: (N, F_in), adj: (N, N), w1s/w2s: (H, F_out, F_in)."""
    n, f_in = x.shape
    h, f_out, _ = w1s.shape
    w_cat = _stack_head_weights(w1s, w2s)          # bf16 on host side
    adj_bf = adj.astype(jnp.bfloat16)              # bf16 on host side (half DMA)
    f_pad = _round_up(f_out, 128)
    kernel = functools.partial(_gnn_layer_kernel, n_head=h, f_out=f_out,
                               active=active, exp_dtype=_default_exp_dtype())
    out = pl.pallas_call(
        kernel,
        out_shape=jax.ShapeDtypeStruct((n, f_pad), jnp.float32),
        in_specs=[pl.BlockSpec((n, f_in), lambda: (0, 0)),
                  pl.BlockSpec((n, n), lambda: (0, 0)),
                  pl.BlockSpec(w_cat.shape, lambda: (0, 0))],
        out_specs=pl.BlockSpec((n, f_pad), lambda: (0, 0)),
        compiler_params=pltpu.CompilerParams(vmem_limit_bytes=_VMEM_LIMIT),
    )(x, adj_bf, w_cat)
    return out[:, :f_out]


def igae_encoder(x, adj, params):
    """Fused IGAE encoder: one pallas_call for all three layers + adjacency recon."""
    n, _ = x.shape
    w1 = _stack_head_weights(params["l1_w1"], params["l1_w2"])
    w2 = _stack_head_weights(params["l2_w1"], params["l2_w2"])
    w3 = _stack_head_weights(params["l3_w1"], params["l3_w2"])
    adj_bf = adj.astype(jnp.bfloat16)
    heads = (params["l1_w1"].shape[0], params["l2_w1"].shape[0],
             params["l3_w1"].shape[0])
    f_outs = (params["l1_w1"].shape[1], params["l2_w1"].shape[1],
              params["l3_w1"].shape[1])
    f_pad = _round_up(f_outs[2], 128)
    kernel = functools.partial(_igae_fused_kernel, heads=heads, f_outs=f_outs,
                               exp_dtype=_default_exp_dtype())
    z_pad, z_igae_adj = pl.pallas_call(
        kernel,
        out_shape=(jax.ShapeDtypeStruct((n, f_pad), jnp.float32),
                   jax.ShapeDtypeStruct((n, n), jnp.float32)),
        in_specs=[pl.BlockSpec(x.shape, lambda: (0, 0)),
                  pl.BlockSpec(adj_bf.shape, lambda: (0, 0)),
                  pl.BlockSpec(w1.shape, lambda: (0, 0)),
                  pl.BlockSpec(w2.shape, lambda: (0, 0)),
                  pl.BlockSpec(w3.shape, lambda: (0, 0))],
        out_specs=(pl.BlockSpec((n, f_pad), lambda: (0, 0)),
                   pl.BlockSpec((n, n), lambda: (0, 0))),
        compiler_params=pltpu.CompilerParams(vmem_limit_bytes=_VMEM_LIMIT),
    )(x, adj_bf, w1, w2, w3)
    return z_pad[:, :f_outs[2]], z_igae_adj


# ------------------------------------------------------------------
# Deterministic parameter init (xavier_uniform, as in the PyTorch module)
# ------------------------------------------------------------------
def xavier_uniform(key, shape):
    f_out, f_in = shape[-2], shape[-1]
    bound = math.sqrt(6.0 / (f_in + f_out))
    return jax.random.uniform(key, shape, jnp.float32, -bound, bound)


def init_params(key, n_input, enc1, enc2, enc3, n_head):
    ks = jax.random.split(key, 6)
    return {
        "l1_w1": xavier_uniform(ks[0], (n_head[0], enc1, n_input)),
        "l1_w2": xavier_uniform(ks[1], (n_head[0], enc1, n_input)),
        "l2_w1": xavier_uniform(ks[2], (n_head[1], enc2, enc1)),
        "l2_w2": xavier_uniform(ks[3], (n_head[1], enc2, enc1)),
        "l3_w1": xavier_uniform(ks[4], (n_head[2], enc3, enc2)),
        "l3_w2": xavier_uniform(ks[5], (n_head[2], enc3, enc2)),
    }


# ------------------------------------------------------------------
# Main
# ------------------------------------------------------------------
if __name__ == "__main__":
    # small graph: N=8 nodes, n_input=16 features
    N = 8
    n_input = 16
    gae_n_enc_1, gae_n_enc_2, gae_n_enc_3 = 32, 32, 16
    n_head = (2, 2, 1)

    key = jax.random.PRNGKey(0)
    kx, ka, kp = jax.random.split(key, 3)

    x = jax.random.normal(kx, (N, n_input), jnp.float32)

    # symmetric adjacency with self loops, row-normalized (typical GNN bias_mat)
    a = (jax.random.uniform(ka, (N, N)) > 0.5).astype(jnp.float32)
    a = jnp.clip(a + a.T, 0.0, 1.0) + jnp.eye(N, dtype=jnp.float32)
    adj = a / jnp.sum(a, axis=-1, keepdims=True)

    params = init_params(kp, n_input, gae_n_enc_1, gae_n_enc_2, gae_n_enc_3, n_head)

    # Fused encoder: one pallas_call for all three GNN layers + sigmoid(z z^T).
    z_igae, z_igae_adj = igae_encoder(x, adj, params)

    # Standalone GNNLayer calls (same math, un-fused) for a consistency check.
    z1 = gnn_layer(x, adj, params["l1_w1"], params["l1_w2"], active=True)
    z2 = gnn_layer(z1, adj, params["l2_w1"], params["l2_w2"], active=True)
    z3 = gnn_layer(z2, adj, params["l3_w1"], params["l3_w2"], active=False)

    jax.block_until_ready((z_igae, z_igae_adj, z3))

    assert z_igae.shape == (N, gae_n_enc_3)
    assert z_igae_adj.shape == (N, N)
    assert bool(jnp.all(jnp.isfinite(z_igae)))
    assert bool(jnp.all(jnp.isfinite(z_igae_adj)))
    assert bool(jnp.allclose(z_igae, z3, atol=1e-2, rtol=1e-2))
    print("KERNEL_OK")
</pallas_src>

<mosaic_0001>
module attributes {stable_mosaic.version = 11 : i64} {
  func.func @_igae_fused_kernel(%arg0: memref<8x16xf32, #tpu.memory_space<vmem>>, %arg1: memref<8x8xbf16, #tpu.memory_space<vmem>>, %arg2: memref<128x16xbf16, #tpu.memory_space<vmem>>, %arg3: memref<128x32xbf16, #tpu.memory_space<vmem>>, %arg4: memref<32x32xbf16, #tpu.memory_space<vmem>>, %arg5: memref<8x128xf32, #tpu.memory_space<vmem>>, %arg6: memref<8x8xf32, #tpu.memory_space<vmem>>) attributes {dimension_semantics = [], scalar_prefetch = 0 : i64, scratch_operands = 0 : i64, tpu.core_type = #tpu.core_type<tc>} {
    %c0 = arith.constant 0 : index
    %c0_0 = arith.constant 0 : index
    %0 = vector.load %arg1[%c0, %c0_0] : memref<8x8xbf16, #tpu.memory_space<vmem>>, vector<8x8xbf16>
    %c0_1 = arith.constant 0 : index
    %c0_2 = arith.constant 0 : index
    %1 = vector.load %arg0[%c0_1, %c0_2] : memref<8x16xf32, #tpu.memory_space<vmem>>, vector<8x16xf32>
    %c0_3 = arith.constant 0 : index
    %c0_4 = arith.constant 0 : index
    %2 = vector.load %arg2[%c0_3, %c0_4] : memref<128x16xbf16, #tpu.memory_space<vmem>>, vector<128x16xbf16>
    %3 = arith.truncf %1 : vector<8x16xf32> to vector<8x16xbf16>
    %cst = arith.constant dense<0.000000e+00> : vector<8x128xf32>
    %4 = tpu.matmul %3, %2, %cst {dimension_numbers = #tpu.dot_dimension_numbers<[1], [1], [0], [0], [0, 0, 1, 0], [], []>} : vector<8x16xbf16>, vector<128x16xbf16>, vector<8x128xf32> -> vector<8x128xf32>
    %5 = math.tanh %4 : vector<8x128xf32>
    %6 = arith.truncf %5 : vector<8x128xf32> to vector<8x128xbf16>
    %cst_5 = arith.constant 1.000000e+00 : bf16
    %7 = vector.broadcast %cst_5 : bf16 to vector<8x1xbf16>
    %cst_6 = arith.constant 0.000000e+00 : f32
    %8 = vector.broadcast %cst_6 : f32 to vector<8x32xf32>
    %9 = vector.extract_strided_slice %6 {offsets = [0, 0], sizes = [8, 32], strides = [1, 1]} : vector<8x128xbf16> to vector<8x32xbf16>
    %10 = vector.extract_strided_slice %6 {offsets = [0, 64], sizes = [8, 32], strides = [1, 1]} : vector<8x128xbf16> to vector<8x32xbf16>
    %cst_7 = arith.constant dense<0.000000e+00> : vector<8x8xf32>
    %11 = tpu.matmul %10, %9, %cst_7 {dimension_numbers = #tpu.dot_dimension_numbers<[1], [1], [0], [0], [0, 0, 1, 0], [], []>} : vector<8x32xbf16>, vector<8x32xbf16>, vector<8x8xf32> -> vector<8x8xf32>
    %cst_8 = arith.constant 0.176776692 : f32
    %12 = vector.broadcast %cst_8 : f32 to vector<8x8xf32>
    %13 = arith.mulf %11, %12 : vector<8x8xf32>
    %14 = math.exp %13 : vector<8x8xf32>
    %15 = arith.truncf %14 : vector<8x8xf32> to vector<8x8xbf16>
    %16 = arith.mulf %15, %0 : vector<8x8xbf16>
    %17 = vector.extract_strided_slice %5 {offsets = [0, 0], sizes = [8, 32], strides = [1, 1]} : vector<8x128xf32> to vector<8x32xf32>
    %18 = math.tanh %17 : vector<8x32xf32>
    %19 = arith.truncf %18 : vector<8x32xf32> to vector<8x32xbf16>
    %20 = tpu.concatenate %19, %7 in 1 : vector<8x32xbf16>, vector<8x1xbf16> -> vector<8x33xbf16>
    %cst_9 = arith.constant dense<0.000000e+00> : vector<8x33xf32>
    %21 = tpu.matmul %16, %20, %cst_9 {dimension_numbers = #tpu.dot_dimension_numbers<[1], [0], [0], [1], [0, 0, 1, 1], [], []>} : vector<8x8xbf16>, vector<8x33xbf16>, vector<8x33xf32> -> vector<8x33xf32>
    %22 = vector.extract_strided_slice %21 {offsets = [0, 32], sizes = [8, 1], strides = [1, 1]} : vector<8x33xf32> to vector<8x1xf32>
    %23 = vector.shape_cast %22 : vector<8x1xf32> to vector<1x8x1xf32>
    %cst_10 = arith.constant dense<0.000000e+00> : vector<1xf32>
    %24 = vector.multi_reduction <add>, %23, %cst_10 [1, 2] : vector<1x8x1xf32> to vector<1xf32>
    %25 = vector.shape_cast %24 : vector<1xf32> to vector<1x1x1xf32>
    %26 = vector.extract %25[0, 0, 0] : f32 from vector<1x1x1xf32>
    %27 = vector.broadcast %26 : f32 to vector<1x1xf32>
    %cst_11 = arith.constant 1.000000e-30 : f32
    %28 = vector.broadcast %cst_11 : f32 to vector<1x1xf32>
    %29 = arith.maximumf %27, %28 : vector<1x1xf32>
    %30 = vector.extract_strided_slice %21 {offsets = [0, 0], sizes = [8, 32], strides = [1, 1]} : vector<8x33xf32> to vector<8x32xf32>
    %31 = tpu.reciprocal %29 {approx = true} : vector<1x1xf32> -> vector<1x1xf32>
    %32 = vector.broadcast %31 : vector<1x1xf32> to vector<8x32xf32>
    %33 = arith.mulf %30, %32 : vector<8x32xf32>
    %34 = arith.addf %8, %33 : vector<8x32xf32>
    %35 = vector.extract_strided_slice %6 {offsets = [0, 32], sizes = [8, 32], strides = [1, 1]} : vector<8x128xbf16> to vector<8x32xbf16>
    %36 = vector.extract_strided_slice %6 {offsets = [0, 96], sizes = [8, 32], strides = [1, 1]} : vector<8x128xbf16> to vector<8x32xbf16>
    %cst_12 = arith.constant dense<0.000000e+00> : vector<8x8xf32>
    %37 = tpu.matmul %36, %35, %cst_12 {dimension_numbers = #tpu.dot_dimension_numbers<[1], [1], [0], [0], [0, 0, 1, 0], [], []>} : vector<8x32xbf16>, vector<8x32xbf16>, vector<8x8xf32> -> vector<8x8xf32>
    %cst_13 = arith.constant 0.176776692 : f32
    %38 = vector.broadcast %cst_13 : f32 to vector<8x8xf32>
    %39 = arith.mulf %37, %38 : vector<8x8xf32>
    %40 = math.exp %39 : vector<8x8xf32>
    %41 = arith.truncf %40 : vector<8x8xf32> to vector<8x8xbf16>
    %42 = arith.mulf %41, %0 : vector<8x8xbf16>
    %43 = vector.extract_strided_slice %5 {offsets = [0, 32], sizes = [8, 32], strides = [1, 1]} : vector<8x128xf32> to vector<8x32xf32>
    %44 = math.tanh %43 : vector<8x32xf32>
    %45 = arith.truncf %44 : vector<8x32xf32> to vector<8x32xbf16>
    %46 = tpu.concatenate %45, %7 in 1 : vector<8x32xbf16>, vector<8x1xbf16> -> vector<8x33xbf16>
    %cst_14 = arith.constant dense<0.000000e+00> : vector<8x33xf32>
    %47 = tpu.matmul %42, %46, %cst_14 {dimension_numbers = #tpu.dot_dimension_numbers<[1], [0], [0], [1], [0, 0, 1, 1], [], []>} : vector<8x8xbf16>, vector<8x33xbf16>, vector<8x33xf32> -> vector<8x33xf32>
    %48 = vector.extract_strided_slice %47 {offsets = [0, 32], sizes = [8, 1], strides = [1, 1]} : vector<8x33xf32> to vector<8x1xf32>
    %49 = vector.shape_cast %48 : vector<8x1xf32> to vector<1x8x1xf32>
    %cst_15 = arith.constant dense<0.000000e+00> : vector<1xf32>
    %50 = vector.multi_reduction <add>, %49, %cst_15 [1, 2] : vector<1x8x1xf32> to vector<1xf32>
    %51 = vector.shape_cast %50 : vector<1xf32> to vector<1x1x1xf32>
    %52 = vector.extract %51[0, 0, 0] : f32 from vector<1x1x1xf32>
    %53 = vector.broadcast %52 : f32 to vector<1x1xf32>
    %cst_16 = arith.constant 1.000000e-30 : f32
    %54 = vector.broadcast %cst_16 : f32 to vector<1x1xf32>
    %55 = arith.maximumf %53, %54 : vector<1x1xf32>
    %56 = vector.extract_strided_slice %47 {offsets = [0, 0], sizes = [8, 32], strides = [1, 1]} : vector<8x33xf32> to vector<8x32xf32>
    %57 = tpu.reciprocal %55 {approx = true} : vector<1x1xf32> -> vector<1x1xf32>
    %58 = vector.broadcast %57 : vector<1x1xf32> to vector<8x32xf32>
    %59 = arith.mulf %56, %58 : vector<8x32xf32>
    %60 = arith.addf %34, %59 : vector<8x32xf32>
    %61 = arith.truncf %60 : vector<8x32xf32> to vector<8x32xbf16>
    %cst_17 = arith.constant dense<0.000000e+00> : vector<8x32xf32>
    %62 = tpu.matmul %0, %61, %cst_17 {dimension_numbers = #tpu.dot_dimension_numbers<[1], [0], [0], [1], [0, 0, 1, 1], [], []>} : vector<8x8xbf16>, vector<8x32xbf16>, vector<8x32xf32> -> vector<8x32xf32>
    %cst_18 = arith.constant 5.000000e-01 : f32
    %63 = vector.broadcast %cst_18 : f32 to vector<8x32xf32>
    %64 = arith.mulf %62, %63 : vector<8x32xf32>
    %c0_19 = arith.constant 0 : index
    %c0_20 = arith.constant 0 : index
    %65 = vector.load %arg3[%c0_19, %c0_20] : memref<128x32xbf16, #tpu.memory_space<vmem>>, vector<128x32xbf16>
    %66 = arith.truncf %64 : vector<8x32xf32> to vector<8x32xbf16>
    %cst_21 = arith.constant dense<0.000000e+00> : vector<8x128xf32>
    %67 = tpu.matmul %66, %65, %cst_21 {dimension_numbers = #tpu.dot_dimension_numbers<[1], [1], [0], [0], [0, 0, 1, 0], [], []>} : vector<8x32xbf16>, vector<128x32xbf16>, vector<8x128xf32> -> vector<8x128xf32>
    %68 = math.tanh %67 : vector<8x128xf32>
    %69 = arith.truncf %68 : vector<8x128xf32> to vector<8x128xbf16>
    %cst_22 = arith.constant 1.000000e+00 : bf16
    %70 = vector.broadcast %cst_22 : bf16 to vector<8x1xbf16>
    %cst_23 = arith.constant 0.000000e+00 : f32
    %71 = vector.broadcast %cst_23 : f32 to vector<8x32xf32>
    %72 = vector.extract_strided_slice %69 {offsets = [0, 0], sizes = [8, 32], strides = [1, 1]} : vector<8x128xbf16> to vector<8x32xbf16>
    %73 = vector.extract_strided_slice %69 {offsets = [0, 64], sizes = [8, 32], strides = [1, 1]} : vector<8x128xbf16> to vector<8x32xbf16>
    %cst_24 = arith.constant dense<0.000000e+00> : vector<8x8xf32>
    %74 = tpu.matmul %73, %72, %cst_24 {dimension_numbers = #tpu.dot_dimension_numbers<[1], [1], [0], [0], [0, 0, 1, 0], [], []>} : vector<8x32xbf16>, vector<8x32xbf16>, vector<8x8xf32> -> vector<8x8xf32>
    %cst_25 = arith.constant 0.176776692 : f32
    %75 = vector.broadcast %cst_25 : f32 to vector<8x8xf32>
    %76 = arith.mulf %74, %75 : vector<8x8xf32>
    %77 = math.exp %76 : vector<8x8xf32>
    %78 = arith.truncf %77 : vector<8x8xf32> to vector<8x8xbf16>
    %79 = arith.mulf %78, %0 : vector<8x8xbf16>
    %80 = vector.extract_strided_slice %68 {offsets = [0, 0], sizes = [8, 32], strides = [1, 1]} : vector<8x128xf32> to vector<8x32xf32>
    %81 = math.tanh %80 : vector<8x32xf32>
    %82 = arith.truncf %81 : vector<8x32xf32> to vector<8x32xbf16>
    %83 = tpu.concatenate %82, %70 in 1 : vector<8x32xbf16>, vector<8x1xbf16> -> vector<8x33xbf16>
    %cst_26 = arith.constant dense<0.000000e+00> : vector<8x33xf32>
    %84 = tpu.matmul %79, %83, %cst_26 {dimension_numbers = #tpu.dot_dimension_numbers<[1], [0], [0], [1], [0, 0, 1, 1], [], []>} : vector<8x8xbf16>, vector<8x33xbf16>, vector<8x33xf32> -> vector<8x33xf32>
    %85 = vector.extract_strided_slice %84 {offsets = [0, 32], sizes = [8, 1], strides = [1, 1]} : vector<8x33xf32> to vector<8x1xf32>
    %86 = vector.shape_cast %85 : vector<8x1xf32> to vector<1x8x1xf32>
    %cst_27 = arith.constant dense<0.000000e+00> : vector<1xf32>
    %87 = vector.multi_reduction <add>, %86, %cst_27 [1, 2] : vector<1x8x1xf32> to vector<1xf32>
    %88 = vector.shape_cast %87 : vector<1xf32> to vector<1x1x1xf32>
    %89 = vector.extract %88[0, 0, 0] : f32 from vector<1x1x1xf32>
    %90 = vector.broadcast %89 : f32 to vector<1x1xf32>
    %cst_28 = arith.constant 1.000000e-30 : f32
    %91 = vector.broadcast %cst_28 : f32 to vector<1x1xf32>
    %92 = arith.maximumf %90, %91 : vector<1x1xf32>
    %93 = vector.extract_strided_slice %84 {offsets = [0, 0], sizes = [8, 32], strides = [1, 1]} : vector<8x33xf32> to vector<8x32xf32>
    %94 = tpu.reciprocal %92 {approx = true} : vector<1x1xf32> -> vector<1x1xf32>
    %95 = vector.broadcast %94 : vector<1x1xf32> to vector<8x32xf32>
    %96 = arith.mulf %93, %95 : vector<8x32xf32>
    %97 = arith.addf %71, %96 : vector<8x32xf32>
    %98 = vector.extract_strided_slice %69 {offsets = [0, 32], sizes = [8, 32], strides = [1, 1]} : vector<8x128xbf16> to vector<8x32xbf16>
    %99 = vector.extract_strided_slice %69 {offsets = [0, 96], sizes = [8, 32], strides = [1, 1]} : vector<8x128xbf16> to vector<8x32xbf16>
    %cst_29 = arith.constant dense<0.000000e+00> : vector<8x8xf32>
    %100 = tpu.matmul %99, %98, %cst_29 {dimension_numbers = #tpu.dot_dimension_numbers<[1], [1], [0], [0], [0, 0, 1, 0], [], []>} : vector<8x32xbf16>, vector<8x32xbf16>, vector<8x8xf32> -> vector<8x8xf32>
    %cst_30 = arith.constant 0.176776692 : f32
    %101 = vector.broadcast %cst_30 : f32 to vector<8x8xf32>
    %102 = arith.mulf %100, %101 : vector<8x8xf32>
    %103 = math.exp %102 : vector<8x8xf32>
    %104 = arith.truncf %103 : vector<8x8xf32> to vector<8x8xbf16>
    %105 = arith.mulf %104, %0 : vector<8x8xbf16>
    %106 = vector.extract_strided_slice %68 {offsets = [0, 32], sizes = [8, 32], strides = [1, 1]} : vector<8x128xf32> to vector<8x32xf32>
    %107 = math.tanh %106 : vector<8x32xf32>
    %108 = arith.truncf %107 : vector<8x32xf32> to vector<8x32xbf16>
    %109 = tpu.concatenate %108, %70 in 1 : vector<8x32xbf16>, vector<8x1xbf16> -> vector<8x33xbf16>
    %cst_31 = arith.constant dense<0.000000e+00> : vector<8x33xf32>
    %110 = tpu.matmul %105, %109, %cst_31 {dimension_numbers = #tpu.dot_dimension_numbers<[1], [0], [0], [1], [0, 0, 1, 1], [], []>} : vector<8x8xbf16>, vector<8x33xbf16>, vector<8x33xf32> -> vector<8x33xf32>
    %111 = vector.extract_strided_slice %110 {offsets = [0, 32], sizes = [8, 1], strides = [1, 1]} : vector<8x33xf32> to vector<8x1xf32>
    %112 = vector.shape_cast %111 : vector<8x1xf32> to vector<1x8x1xf32>
    %cst_32 = arith.constant dense<0.000000e+00> : vector<1xf32>
    %113 = vector.multi_reduction <add>, %112, %cst_32 [1, 2] : vector<1x8x1xf32> to vector<1xf32>
    %114 = vector.shape_cast %113 : vector<1xf32> to vector<1x1x1xf32>
    %115 = vector.extract %114[0, 0, 0] : f32 from vector<1x1x1xf32>
    %116 = vector.broadcast %115 : f32 to vector<1x1xf32>
    %cst_33 = arith.constant 1.000000e-30 : f32
    %117 = vector.broadcast %cst_33 : f32 to vector<1x1xf32>
    %118 = arith.maximumf %116, %117 : vector<1x1xf32>
    %119 = vector.extract_strided_slice %110 {offsets = [0, 0], sizes = [8, 32], strides = [1, 1]} : vector<8x33xf32> to vector<8x32xf32>
    %120 = tpu.reciprocal %118 {approx = true} : vector<1x1xf32> -> vector<1x1xf32>
    %121 = vector.broadcast %120 : vector<1x1xf32> to vector<8x32xf32>
    %122 = arith.mulf %119, %121 : vector<8x32xf32>
    %123 = arith.addf %97, %122 : vector<8x32xf32>
    %124 = arith.truncf %123 : vector<8x32xf32> to vector<8x32xbf16>
    %cst_34 = arith.constant dense<0.000000e+00> : vector<8x32xf32>
    %125 = tpu.matmul %0, %124, %cst_34 {dimension_numbers = #tpu.dot_dimension_numbers<[1], [0], [0], [1], [0, 0, 1, 1], [], []>} : vector<8x8xbf16>, vector<8x32xbf16>, vector<8x32xf32> -> vector<8x32xf32>
    %cst_35 = arith.constant 5.000000e-01 : f32
    %126 = vector.broadcast %cst_35 : f32 to vector<8x32xf32>
    %127 = arith.mulf %125, %126 : vector<8x32xf32>
    %c0_36 = arith.constant 0 : index
    %c0_37 = arith.constant 0 : index
    %128 = vector.load %arg4[%c0_36, %c0_37] : memref<32x32xbf16, #tpu.memory_space<vmem>>, vector<32x32xbf16>
    %129 = arith.truncf %127 : vector<8x32xf32> to vector<8x32xbf16>
    %cst_38 = arith.constant dense<0.000000e+00> : vector<8x32xf32>
    %130 = tpu.matmul %129, %128, %cst_38 {dimension_numbers = #tpu.dot_dimension_numbers<[1], [1], [0], [0], [0, 0, 1, 0], [], []>} : vector<8x32xbf16>, vector<32x32xbf16>, vector<8x32xf32> -> vector<8x32xf32>
    %131 = math.tanh %130 : vector<8x32xf32>
    %132 = arith.truncf %131 : vector<8x32xf32> to vector<8x32xbf16>
    %cst_39 = arith.constant 1.000000e+00 : bf16
    %133 = vector.broadcast %cst_39 : bf16 to vector<8x1xbf16>
    %cst_40 = arith.constant 0.000000e+00 : f32
    %134 = vector.broadcast %cst_40 : f32 to vector<8x16xf32>
    %135 = vector.extract_strided_slice %132 {offsets = [0, 0], sizes = [8, 16], strides = [1, 1]} : vector<8x32xbf16> to vector<8x16xbf16>
    %136 = vector.extract_strided_slice %132 {offsets = [0, 16], sizes = [8, 16], strides = [1, 1]} : vector<8x32xbf16> to vector<8x16xbf16>
    %cst_41 = arith.constant dense<0.000000e+00> : vector<8x8xf32>
    %137 = tpu.matmul %136, %135, %cst_41 {dimension_numbers = #tpu.dot_dimension_numbers<[1], [1], [0], [0], [0, 0, 1, 0], [], []>} : vector<8x16xbf16>, vector<8x16xbf16>, vector<8x8xf32> -> vector<8x8xf32>
    %cst_42 = arith.constant 2.500000e-01 : f32
    %138 = vector.broadcast %cst_42 : f32 to vector<8x8xf32>
    %139 = arith.mulf %137, %138 : vector<8x8xf32>
    %140 = math.exp %139 : vector<8x8xf32>
    %141 = arith.truncf %140 : vector<8x8xf32> to vector<8x8xbf16>
    %142 = arith.mulf %141, %0 : vector<8x8xbf16>
    %143 = tpu.concatenate %135, %133 in 1 : vector<8x16xbf16>, vector<8x1xbf16> -> vector<8x17xbf16>
    %cst_43 = arith.constant dense<0.000000e+00> : vector<8x17xf32>
    %144 = tpu.matmul %142, %143, %cst_43 {dimension_numbers = #tpu.dot_dimension_numbers<[1], [0], [0], [1], [0, 0, 1, 1], [], []>} : vector<8x8xbf16>, vector<8x17xbf16>, vector<8x17xf32> -> vector<8x17xf32>
    %145 = vector.extract_strided_slice %144 {offsets = [0, 16], sizes = [8, 1], strides = [1, 1]} : vector<8x17xf32> to vector<8x1xf32>
    %146 = vector.shape_cast %145 : vector<8x1xf32> to vector<1x8x1xf32>
    %cst_44 = arith.constant dense<0.000000e+00> : vector<1xf32>
    %147 = vector.multi_reduction <add>, %146, %cst_44 [1, 2] : vector<1x8x1xf32> to vector<1xf32>
    %148 = vector.shape_cast %147 : vector<1xf32> to vector<1x1x1xf32>
    %149 = vector.extract %148[0, 0, 0] : f32 from vector<1x1x1xf32>
    %150 = vector.broadcast %149 : f32 to vector<1x1xf32>
    %cst_45 = arith.constant 1.000000e-30 : f32
    %151 = vector.broadcast %cst_45 : f32 to vector<1x1xf32>
    %152 = arith.maximumf %150, %151 : vector<1x1xf32>
    %153 = vector.extract_strided_slice %144 {offsets = [0, 0], sizes = [8, 16], strides = [1, 1]} : vector<8x17xf32> to vector<8x16xf32>
    %154 = tpu.reciprocal %152 {approx = true} : vector<1x1xf32> -> vector<1x1xf32>
    %155 = vector.broadcast %154 : vector<1x1xf32> to vector<8x16xf32>
    %156 = arith.mulf %153, %155 : vector<8x16xf32>
    %157 = arith.addf %134, %156 : vector<8x16xf32>
    %158 = arith.truncf %157 : vector<8x16xf32> to vector<8x16xbf16>
    %cst_46 = arith.constant dense<0.000000e+00> : vector<8x16xf32>
    %159 = tpu.matmul %0, %158, %cst_46 {dimension_numbers = #tpu.dot_dimension_numbers<[1], [0], [0], [1], [0, 0, 1, 1], [], []>} : vector<8x8xbf16>, vector<8x16xbf16>, vector<8x16xf32> -> vector<8x16xf32>
    %cst_47 = arith.constant 1.000000e+00 : f32
    %160 = vector.broadcast %cst_47 : f32 to vector<8x16xf32>
    %161 = arith.mulf %159, %160 : vector<8x16xf32>
    %cst_48 = arith.constant 0.000000e+00 : f32
    %162 = vector.broadcast %cst_48 : f32 to vector<8x112xf32>
    %163 = tpu.concatenate %161, %162 in 1 : vector<8x16xf32>, vector<8x112xf32> -> vector<8x128xf32>
    %c0_49 = arith.constant 0 : index
    %c0_50 = arith.constant 0 : index
    %164 = vector.load %arg5[%c0_49, %c0_50] : memref<8x128xf32, #tpu.memory_space<vmem>>, vector<8x128xf32>
    tpu.vector_store %arg5[%c0_49, %c0_50], %163 {strides = array<i32>} : memref<8x128xf32, #tpu.memory_space<vmem>>, vector<8x128xf32>,
    %165 = arith.truncf %161 : vector<8x16xf32> to vector<8x16xbf16>
    %cst_51 = arith.constant dense<0.000000e+00> : vector<8x8xf32>
    %166 = tpu.matmul %165, %165, %cst_51 {dimension_numbers = #tpu.dot_dimension_numbers<[1], [1], [0], [0], [0, 0, 1, 0], [], []>} : vector<8x16xbf16>, vector<8x16xbf16>, vector<8x8xf32> -> vector<8x8xf32>
    %167 = arith.negf %166 : vector<8x8xf32>
    %168 = math.exp %167 : vector<8x8xf32>
    %cst_52 = arith.constant 1.000000e+00 : f32
    %169 = vector.broadcast %cst_52 : f32 to vector<8x8xf32>
    %170 = arith.addf %169, %168 : vector<8x8xf32>
    %171 = arith.divf %169, %170 : vector<8x8xf32>
    %c0_53 = arith.constant 0 : index
    %c0_54 = arith.constant 0 : index
    %172 = vector.load %arg6[%c0_53, %c0_54] : memref<8x8xf32, #tpu.memory_space<vmem>>, vector<8x8xf32>
    tpu.vector_store %arg6[%c0_53, %c0_54], %171 {strides = array<i32>} : memref<8x8xf32, #tpu.memory_space<vmem>>, vector<8x8xf32>,
    return
  }
}

</mosaic_0001>

<llo_original>
// kernel: tpu_custom_call.1
$region0: #{tpu_custom_call.1}
  #allocation0 [shape = 'u32[]', space=smem, size = 0x4, offset = 0x4, fixed_abs, tag = 'smem constant byte address 0x4 - core index']
  #allocation1 [shape = 'u32[144,128]{1,0:T(1,128)}', space=vmem, size = 0x12000, scoped, tag = 'internal scratch']
  %s0 = inlined_call_operand.vmem [shape: f32[8,16], index: 0, kind: input, shape index: {}]
  %s1 = inlined_call_operand.vmem [shape: bf16[8,8], index: 1, kind: input, shape index: {}]
  %s2 = inlined_call_operand.vmem [shape: bf16[128,16], index: 2, kind: input, shape index: {}]
  %s3 = inlined_call_operand.vmem [shape: bf16[128,32], index: 3, kind: input, shape index: {}]
  %s4 = inlined_call_operand.vmem [shape: bf16[32,32], index: 4, kind: input, shape index: {}]
  %s5 = inlined_call_operand.hbm [shape: f32[8,128], index: 5, kind: output, shape index: {0}]
  %s6 = inlined_call_operand.hbm [shape: f32[8,8], index: 6, kind: output, shape index: {1}]
  %7 = xla_tuple %s5, %s6
  %s8 = sld [smem:[#allocation0]]
  $region38: #{tpu_custom_call.1} parent=0
    _
  %s10 = ssub.s32 1, %s8
  %s11 = scalar_select 0, %s10, %s8
  $region1: #{tpu_custom_call.1} parent=0
    #allocation2 [shape = 'u8[4096]{0}', space=vmem, size = 0x1000, scoped, tag = 'output window, operand 0, single buffered']
    #allocation3 [shape = 's32[1]{0}', space=sflag, size = 0x4, scoped, tag = 'scoped memory for tpu_custom_call.1']
    #allocation4 [shape = 'u8[4096]{0}', space=vmem, size = 0x1000, scoped, tag = 'output window, operand 1, single buffered']
    #allocation5 [shape = 's32[1]{0}', space=sflag, size = 0x4, scoped, tag = 'scoped memory for tpu_custom_call.1']
    %12 = vsyncpa [#allocation3], 0
    %13 = vsyncpa [#allocation5], 0
    // Predicated region
    $region2: #{tpu_custom_call.1} parent=1 // pred_check
      _
    $region3: #{tpu_custom_call.1} parent=1 // pred_check_branch
      %15 = sbr.rel (0) target = $region5
    $region4: #{tpu_custom_call.1} parent=1 // pred_region
      _
    $region5: #{tpu_custom_call.1} parent=1 // pred_fallthru
      _
    // Predicated region
    $region6: #{tpu_custom_call.1} parent=1 // pred_check
      _
    $region7: #{tpu_custom_call.1} parent=1 // pred_check_branch
      %17 = sbr.rel (0) target = $region9
    $region8: #{tpu_custom_call.1} parent=1 // pred_region
      _
    $region9: #{tpu_custom_call.1} parent=1 // pred_fallthru
      _
    // Predicated region
    $region10: #{tpu_custom_call.1} parent=1 // pred_check
      _
    $region11: #{tpu_custom_call.1} parent=1 // pred_check_branch
      %19 = sbr.rel (0) target = $region13
    $region12: #{tpu_custom_call.1} parent=1 // pred_region
      _
    $region13: #{tpu_custom_call.1} parent=1 // pred_fallthru
      _
    // Predicated region
    $region14: #{tpu_custom_call.1} parent=1 // pred_check
      _
    $region15: #{tpu_custom_call.1} parent=1 // pred_check_branch
      %21 = sbr.rel (0) target = $region17
    $region16: #{tpu_custom_call.1} parent=1 // pred_region
      _
    $region17: #{tpu_custom_call.1} parent=1 // pred_fallthru
      _
    // Predicated region
    $region18: #{tpu_custom_call.1} parent=1 // pred_check
      _
    $region19: #{tpu_custom_call.1} parent=1 // pred_check_branch
      %23 = sbr.rel (0) target = $region21
    $region20: #{tpu_custom_call.1} parent=1 // pred_region
      _
    $region21: #{tpu_custom_call.1} parent=1 // pred_fallthru
      _
    %v26 = vld [vmem:[%s1] sm:$0xf]
    %v27 = vld [vmem:[%s0] sm:$0xff]
    %v28 = vld [vmem:[%s2] sm:$0xf]
    %v29 = vld [vmem:[%s2 + $0x4] sm:$0xf]
    %v30 = vld [vmem:[%s2 + $0x8] sm:$0xf]
    %v31 = vld [vmem:[%s2 + $0xc] sm:$0xf]
    %v32 = vld [vmem:[%s2 + $0x10] sm:$0xf]
    %v33 = vld [vmem:[%s2 + $0x14] sm:$0xf]
    %v34 = vld [vmem:[%s2 + $0x18] sm:$0xf]
    %v35 = vld [vmem:[%s2 + $0x1c] sm:$0xf]
    %v36 = vld [vmem:[%s2 + $0x20] sm:$0xf]
    %v37 = vld [vmem:[%s2 + $0x24] sm:$0xf]
    %v38 = vld [vmem:[%s2 + $0x28] sm:$0xf]
    %v39 = vld [vmem:[%s2 + $0x2c] sm:$0xf]
    %v40 = vld [vmem:[%s2 + $0x30] sm:$0xf]
    %v41 = vld [vmem:[%s2 + $0x34] sm:$0xf]
    %v42 = vld [vmem:[%s2 + $0x38] sm:$0xf]
    %v43 = vld [vmem:[%s2 + $0x3c] sm:$0xf]
    %v44 = vpack.c.bf16 %v27, %v27
    %v61 = vunpack.c.l.b16 %v28
    %v62 = vunpack.c.l.b16 %v29
    %v63 = vunpack.c.l.b16 %v30
    %v64 = vunpack.c.l.b16 %v31
    %v65 = vunpack.c.l.b16 %v32
    %v66 = vunpack.c.l.b16 %v33
    %v67 = vunpack.c.l.b16 %v34
    %v68 = vunpack.c.l.b16 %v35
    %v69 = vunpack.c.l.b16 %v36
    %v70 = vunpack.c.l.b16 %v37
    %v71 = vunpack.c.l.b16 %v38
    %v72 = vunpack.c.l.b16 %v39
    %v73 = vunpack.c.l.b16 %v40
    %v74 = vunpack.c.l.b16 %v41
    %v75 = vunpack.c.l.b16 %v42
    %v76 = vunpack.c.l.b16 %v43
    %v77 = vpack.c.b16 %v62, %v61
    %v78 = vpack.c.b16 %v64, %v63
    %v79 = vpack.c.b16 %v66, %v65
    %v80 = vpack.c.b16 %v68, %v67
    %v81 = vpack.c.b16 %v70, %v69
    %v82 = vpack.c.b16 %v72, %v71
    %v83 = vpack.c.b16 %v74, %v73
    %v84 = vpack.c.b16 %v76, %v75
    %vm85 = vcmask 130048
    %v87 = vsel %vm85, %v44, 0
    %v90 = vsel %vm85, %v77, 0
    %v93 = vsel %vm85, %v78, 0
    %v96 = vsel %vm85, %v79, 0
    %v99 = vsel %vm85, %v80, 0
    %v102 = vsel %vm85, %v81, 0
    %v105 = vsel %vm85, %v82, 0
    %v108 = vsel %vm85, %v83, 0
    %v111 = vsel %vm85, %v84, 0
    %113 = vmatprep.subr.bf16.mxu0 0
    %114 = vmatpush1.bf16.xpose.msra.mxu0 %v90
    %115 = vmatprep.subr.bf16.mxu0 0
    %116 = vmatpush1.bf16.xpose.msra.mxu0 %v93
    %117 = vmatprep.subr.bf16.mxu0 0
    %118 = vmatpush1.bf16.xpose.msra.mxu0 %v96
    %119 = vmatprep.subr.bf16.mxu0 0
    %120 = vmatpush1.bf16.xpose.msra.mxu0 %v99
    %121 = vmatprep.subr.bf16.mxu0 0
    %122 = vmatpush1.bf16.xpose.msra.mxu0 %v102
    %123 = vmatprep.subr.bf16.mxu0 0
    %124 = vmatpush1.bf16.xpose.msra.mxu0 %v105
    %125 = vmatprep.subr.bf16.mxu0 0
    %126 = vmatpush1.bf16.xpose.msra.mxu0 %v108
    %127 = vmatprep.subr.bf16.mxu0 0
    %128 = vmatpush1.bf16.xpose.msra.mxu0 %v111
    %129 = vmatprep.subr.bf16.mxu0 0
    %130 = vmatpush1.bf16.xpose.msra.mxu0 0
    %131 = vmatprep.subr.bf16.mxu0 0
    %132 = vmatpush1.bf16.xpose.msra.mxu0 0
    %133 = vmatprep.subr.bf16.mxu0 0
    %134 = vmatpush1.bf16.xpose.msra.mxu0 0
    %135 = vmatprep.subr.bf16.mxu0 0
    %136 = vmatpush1.bf16.xpose.msra.mxu0 0
    %137 = vmatprep.subr.bf16.mxu0 0
    %138 = vmatpush1.bf16.xpose.msra.mxu0 0
    %139 = vmatprep.subr.bf16.mxu0 0
    %140 = vmatpush1.bf16.xpose.msra.mxu0 0
    %141 = vmatprep.subr.bf16.mxu0 0
    %142 = vmatpush1.bf16.xpose.msra.mxu0 0
    %143 = vmatprep.subr.bf16.mxu0 0
    %144 = vmatpush1.bf16.xpose.msra.mxu0 0
    %145 = vmatprep.mubr.bf16.mxu0 0
    %146 = vmatmul.mubr.bf16.gmra.mrb[0].mxu0 %v87
    %v147 = vpop.f32.mrb[0].mxu0
    %v148 = vadd.f32 0.0, %v147
    %v149 = vpop.f32.mrb[0].mxu0
    %v150 = vpop.f32.mrb[0].mxu0
    %v151 = vpop.f32.mrb[0].mxu0
    %152 = vdwg.mxu0
    %v153 = vtanh.pop %v148
    %v154 = vpack.c.bf16 %v153, %v153
    %156 = vrot.lane.b32.xlu0 %v154, 64
    %v157 = vpop.permute.xlu0 %156
    %vm158 = vcmask 261120
    %v160 = vsel %vm158, %v157, 0
    %v163 = vsel %vm158, %v154, 0
    %165 = vmatprep.subr.bf16.mxu0 0
    %166 = vmatpush1.bf16.xpose.msra.mxu0 %v163
    %167 = vmatprep.subr.bf16.mxu0 0
    %168 = vmatpush1.bf16.xpose.msra.mxu0 0
    %169 = vmatprep.subr.bf16.mxu0 0
    %170 = vmatpush1.bf16.xpose.msra.mxu0 0
    %171 = vmatprep.subr.bf16.mxu0 0
    %172 = vmatpush1.bf16.xpose.msra.mxu0 0
    %173 = vmatprep.subr.bf16.mxu0 0
    %174 = vmatpush1.bf16.xpose.msra.mxu0 0
    %175 = vmatprep.subr.bf16.mxu0 0
    %176 = vmatpush1.bf16.xpose.msra.mxu0 0
    %177 = vmatprep.subr.bf16.mxu0 0
    %178 = vmatpush1.bf16.xpose.msra.mxu0 0
    %179 = vmatprep.subr.bf16.mxu0 0
    %180 = vmatpush1.bf16.xpose.msra.mxu0 0
    %181 = vmatprep.subr.bf16.mxu0 0
    %182 = vmatpush1.bf16.xpose.msra.mxu0 0
    %183 = vmatprep.subr.bf16.mxu0 0
    %184 = vmatpush1.bf16.xpose.msra.mxu0 0
    %185 = vmatprep.subr.bf16.mxu0 0
    %186 = vmatpush1.bf16.xpose.msra.mxu0 0
    %187 = vmatprep.subr.bf16.mxu0 0
    %188 = vmatpush1.bf16.xpose.msra.mxu0 0
    %189 = vmatprep.subr.bf16.mxu0 0
    %190 = vmatpush1.bf16.xpose.msra.mxu0 0
    %191 = vmatprep.subr.bf16.mxu0 0
    %192 = vmatpush1.bf16.xpose.msra.mxu0 0
    %193 = vmatprep.subr.bf16.mxu0 0
    %194 = vmatpush1.bf16.xpose.msra.mxu0 0
    %195 = vmatprep.subr.bf16.mxu0 0
    %196 = vmatpush1.bf16.xpose.msra.mxu0 0
    %197 = vmatprep.mubr.bf16.mxu0 0
    %198 = vmatmul.mubr.bf16.gmra.mrb[0].mxu0 %v160
    %v199 = vpop.f32.mrb[0].mxu0
    %v200 = vadd.f32 0.0, %v199
    %v201 = vpop.f32.mrb[0].mxu0
    %v202 = vpop.f32.mrb[0].mxu0
    %v203 = vpop.f32.mrb[0].mxu0
    %204 = vdwg.mxu0
    %v205 = vmul.f32 %v200, 0.17677669
    %v206 = vmul.f32 %v205, 1.442695
    %v207 = vpow.pop %v206
    %v208 = vpack.c.bf16 %v207, %v207
    %v209 = vmul.bf16 %v208, %v26
    %v210 = vtanh.pop %v153
    %v211 = vpack.c.bf16 %v210, %v210
    %v214 = vsel %vm158, %v211, 1065369472
    %vm215 = vcmask 64512
    %v217 = vsel %vm215, %v209, 0
    %vm219 = vcmask 1043456
    %v220 = vsel %vm219, %v214, 0
    %222 = vmatprep.subr.bf16.mxu0 0
    %223 = vmatpush1.bf16.msra.mxu0 %v220
    %224 = vmatprep.subr.bf16.mxu0 0
    %225 = vmatpush1.bf16.msra.mxu0 0
    %226 = vmatprep.subr.bf16.mxu0 0
    %227 = vmatpush1.bf16.msra.mxu0 0
    %228 = vmatprep.subr.bf16.mxu0 0
    %229 = vmatpush1.bf16.msra.mxu0 0
    %230 = vmatprep.subr.bf16.mxu0 0
    %231 = vmatpush1.bf16.msra.mxu0 0
    %232 = vmatprep.subr.bf16.mxu0 0
    %233 = vmatpush1.bf16.msra.mxu0 0
    %234 = vmatprep.subr.bf16.mxu0 0
    %235 = vmatpush1.bf16.msra.mxu0 0
    %236 = vmatprep.subr.bf16.mxu0 0
    %237 = vmatpush1.bf16.msra.mxu0 0
    %238 = vmatprep.subr.bf16.mxu0 0
    %239 = vmatpush1.bf16.msra.mxu0 0
    %240 = vmatprep.subr.bf16.mxu0 0
    %241 = vmatpush1.bf16.msra.mxu0 0
    %242 = vmatprep.subr.bf16.mxu0 0
    %243 = vmatpush1.bf16.msra.mxu0 0
    %244 = vmatprep.subr.bf16.mxu0 0
    %245 = vmatpush1.bf16.msra.mxu0 0
    %246 = vmatprep.subr.bf16.mxu0 0
    %247 = vmatpush1.bf16.msra.mxu0 0
    %248 = vmatprep.subr.bf16.mxu0 0
    %249 = vmatpush1.bf16.msra.mxu0 0
    %250 = vmatprep.subr.bf16.mxu0 0
    %251 = vmatpush1.bf16.msra.mxu0 0
    %252 = vmatprep.subr.bf16.mxu0 0
    %253 = vmatpush1.bf16.msra.mxu0 0
    %254 = vmatprep.mubr.bf16.mxu0 0
    %255 = vmatmul.mubr.bf16.gmra.mrb[0].mxu0 %v217
    %v256 = vpop.f32.mrb[0].mxu0
    %v257 = vadd.f32 0.0, %v256
    %v258 = vpop.f32.mrb[0].mxu0
    %v259 = vpop.f32.mrb[0].mxu0
    %v260 = vpop.f32.mrb[0].mxu0
    %261 = vdwg.mxu0
    %263 = vrot.lane.b32.xlu0 %v257, 96
    %v264 = vpop.permute.xlu0 %263
    %vm266 = vcmask 7168
    %v267 = vsel %vm266, %v264, 0.0
    %268 = vadd.xlane.f32.xlu0 %v267
    %v269 = vpop.xlane.xlu0 %268
    %v270 = vrot.slane %v269, 4
    %v271 = vadd.f32 %v269, %v270
    %v272 = vrot.slane %v271, 2
    %v273 = vadd.f32 %v271, %v272
    %v274 = vrot.slane %v273, 1
    %v275 = vadd.f32 %v273, %v274
    %s276 = vtos %v275
    %v277 = vstv %s276
    %v278 = vmax.f32 %v277, 1e-30
    %v279 = vrcp.pop %v278
    %v280 = vmul.f32 %v257, %v279
    %v281 = vadd.f32 %v280, 0.0
    %282 = vrot.lane.b32.xlu0 %v154, 32
    %v283 = vpop.permute.xlu0 %282
    %284 = vrot.lane.b32.xlu0 %v154, 96
    %v285 = vpop.permute.xlu0 %284
    %v287 = vsel %vm158, %v283, 0
    %v290 = vsel %vm158, %v285, 0
    %292 = vmatprep.subr.bf16.mxu0 0
    %293 = vmatpush1.bf16.xpose.msra.mxu0 %v290
    %294 = vmatprep.subr.bf16.mxu0 0
    %295 = vmatpush1.bf16.xpose.msra.mxu0 0
    %296 = vmatprep.subr.bf16.mxu0 0
    %297 = vmatpush1.bf16.xpose.msra.mxu0 0
    %298 = vmatprep.subr.bf16.mxu0 0
    %299 = vmatpush1.bf16.xpose.msra.mxu0 0
    %300 = vmatprep.subr.bf16.mxu0 0
    %301 = vmatpush1.bf16.xpose.msra.mxu0 0
    %302 = vmatprep.subr.bf16.mxu0 0
    %303 = vmatpush1.bf16.xpose.msra.mxu0 0
    %304 = vmatprep.subr.bf16.mxu0 0
    %305 = vmatpush1.bf16.xpose.msra.mxu0 0
    %306 = vmatprep.subr.bf16.mxu0 0
    %307 = vmatpush1.bf16.xpose.msra.mxu0 0
    %308 = vmatprep.subr.bf16.mxu0 0
    %309 = vmatpush1.bf16.xpose.msra.mxu0 0
    %310 = vmatprep.subr.bf16.mxu0 0
    %311 = vmatpush1.bf16.xpose.msra.mxu0 0
    %312 = vmatprep.subr.bf16.mxu0 0
    %313 = vmatpush1.bf16.xpose.msra.mxu0 0
    %314 = vmatprep.subr.bf16.mxu0 0
    %315 = vmatpush1.bf16.xpose.msra.mxu0 0
    %316 = vmatprep.subr.bf16.mxu0 0
    %317 = vmatpush1.bf16.xpose.msra.mxu0 0
    %318 = vmatprep.subr.bf16.mxu0 0
    %319 = vmatpush1.bf16.xpose.msra.mxu0 0
    %320 = vmatprep.subr.bf16.mxu0 0
    %321 = vmatpush1.bf16.xpose.msra.mxu0 0
    %322 = vmatprep.subr.bf16.mxu0 0
    %323 = vmatpush1.bf16.xpose.msra.mxu0 0
    %324 = vmatprep.mubr.bf16.mxu0 0
    %325 = vmatmul.mubr.bf16.gmra.mrb[0].mxu0 %v287
    %v326 = vpop.f32.mrb[0].mxu0
    %v327 = vadd.f32 0.0, %v326
    %v328 = vpop.f32.mrb[0].mxu0
    %v329 = vpop.f32.mrb[0].mxu0
    %v330 = vpop.f32.mrb[0].mxu0
    %331 = vdwg.mxu0
    %v332 = vmul.f32 %v327, 0.17677669
    %v333 = vmul.f32 %v332, 1.442695
    %v334 = vpow.pop %v333
    %v335 = vpack.c.bf16 %v334, %v334
    %v336 = vmul.bf16 %v335, %v26
    %338 = vrot.lane.b32.xlu0 %v211, 96
    %v339 = vpop.permute.xlu0 %338
    %v341 = vsel %vm158, %v339, 1065369472
    %v343 = vsel %vm215, %v336, 0
    %v345 = vsel %vm219, %v341, 0
    %347 = vmatprep.subr.bf16.mxu0 0
    %348 = vmatpush1.bf16.msra.mxu0 %v345
    %349 = vmatprep.subr.bf16.mxu0 0
    %350 = vmatpush1.bf16.msra.mxu0 0
    %351 = vmatprep.subr.bf16.mxu0 0
    %352 = vmatpush1.bf16.msra.mxu0 0
    %353 = vmatprep.subr.bf16.mxu0 0
    %354 = vmatpush1.bf16.msra.mxu0 0
    %355 = vmatprep.subr.bf16.mxu0 0
    %356 = vmatpush1.bf16.msra.mxu0 0
    %357 = vmatprep.subr.bf16.mxu0 0
    %358 = vmatpush1.bf16.msra.mxu0 0
    %359 = vmatprep.subr.bf16.mxu0 0
    %360 = vmatpush1.bf16.msra.mxu0 0
    %361 = vmatprep.subr.bf16.mxu0 0
    %362 = vmatpush1.bf16.msra.mxu0 0
    %363 = vmatprep.subr.bf16.mxu0 0
    %364 = vmatpush1.bf16.msra.mxu0 0
    %365 = vmatprep.subr.bf16.mxu0 0
    %366 = vmatpush1.bf16.msra.mxu0 0
    %367 = vmatprep.subr.bf16.mxu0 0
    %368 = vmatpush1.bf16.msra.mxu0 0
    %369 = vmatprep.subr.bf16.mxu0 0
    %370 = vmatpush1.bf16.msra.mxu0 0
    %371 = vmatprep.subr.bf16.mxu0 0
    %372 = vmatpush1.bf16.msra.mxu0 0
    %373 = vmatprep.subr.bf16.mxu0 0
    %374 = vmatpush1.bf16.msra.mxu0 0
    %375 = vmatprep.subr.bf16.mxu0 0
    %376 = vmatpush1.bf16.msra.mxu0 0
    %377 = vmatprep.subr.bf16.mxu0 0
    %378 = vmatpush1.bf16.msra.mxu0 0
    %379 = vmatprep.mubr.bf16.mxu0 0
    %380 = vmatmul.mubr.bf16.gmra.mrb[0].mxu0 %v343
    %v381 = vpop.f32.mrb[0].mxu0
    %v382 = vadd.f32 0.0, %v381
    %v383 = vpop.f32.mrb[0].mxu0
    %v384 = vpop.f32.mrb[0].mxu0
    %v385 = vpop.f32.mrb[0].mxu0
    %386 = vdwg.mxu0
    %388 = vrot.lane.b32.xlu0 %v382, 96
    %v389 = vpop.permute.xlu0 %388
    %v391 = vsel %vm266, %v389, 0.0
    %392 = vadd.xlane.f32.xlu0 %v391
    %v393 = vpop.xlane.xlu0 %392
    %v394 = vrot.slane %v393, 4
    %v395 = vadd.f32 %v393, %v394
    %v396 = vrot.slane %v395, 2
    %v397 = vadd.f32 %v395, %v396
    %v398 = vrot.slane %v397, 1
    %v399 = vadd.f32 %v397, %v398
    %s400 = vtos %v399
    %v401 = vstv %s400
    %v402 = vmax.f32 %v401, 1e-30
    %v403 = vrcp.pop %v402
    %v404 = vmul.f32 %v382, %v403
    %v405 = vadd.f32 %v281, %v404
    %v406 = vpack.c.bf16 %v405, %v405
    %v408 = vsel %vm215, %v26, 0
    %v411 = vsel %vm219, %v406, 0
    %413 = vmatprep.subr.bf16.mxu0 0
    %414 = vmatpush1.bf16.msra.mxu0 %v411
    %415 = vmatprep.subr.bf16.mxu0 0
    %416 = vmatpush1.bf16.msra.mxu0 0
    %417 = vmatprep.subr.bf16.mxu0 0
    %418 = vmatpush1.bf16.msra.mxu0 0
    %419 = vmatprep.subr.bf16.mxu0 0
    %420 = vmatpush1.bf16.msra.mxu0 0
    %421 = vmatprep.subr.bf16.mxu0 0
    %422 = vmatpush1.bf16.msra.mxu0 0
    %423 = vmatprep.subr.bf16.mxu0 0
    %424 = vmatpush1.bf16.msra.mxu0 0
    %425 = vmatprep.subr.bf16.mxu0 0
    %426 = vmatpush1.bf16.msra.mxu0 0
    %427 = vmatprep.subr.bf16.mxu0 0
    %428 = vmatpush1.bf16.msra.mxu0 0
    %429 = vmatprep.subr.bf16.mxu0 0
    %430 = vmatpush1.bf16.msra.mxu0 0
    %431 = vmatprep.subr.bf16.mxu0 0
    %432 = vmatpush1.bf16.msra.mxu0 0
    %433 = vmatprep.subr.bf16.mxu0 0
    %434 = vmatpush1.bf16.msra.mxu0 0
    %435 = vmatprep.subr.bf16.mxu0 0
    %436 = vmatpush1.bf16.msra.mxu0 0
    %437 = vmatprep.subr.bf16.mxu0 0
    %438 = vmatpush1.bf16.msra.mxu0 0
    %439 = vmatprep.subr.bf16.mxu0 0
    %440 = vmatpush1.bf16.msra.mxu0 0
    %441 = vmatprep.subr.bf16.mxu0 0
    %442 = vmatpush1.bf16.msra.mxu0 0
    %443 = vmatprep.subr.bf16.mxu0 0
    %444 = vmatpush1.bf16.msra.mxu0 0
    %445 = vmatprep.mubr.bf16.mxu0 0
    %446 = vmatmul.mubr.bf16.gmra.mrb[0].mxu0 %v408
    %v447 = vpop.f32.mrb[0].mxu0
    %v448 = vadd.f32 0.0, %v447
    %v449 = vpop.f32.mrb[0].mxu0
    %v450 = vpop.f32.mrb[0].mxu0
    %v451 = vpop.f32.mrb[0].mxu0
    %452 = vdwg.mxu0
    %v453 = vmul.f32 %v448, 0.5
    %v454 = vld [vmem:[%s3] sm:$0xf]
    %v455 = vld [vmem:[%s3 + $0x4] sm:$0xf]
    %v456 = vld [vmem:[%s3 + $0x8] sm:$0xf]
    %v457 = vld [vmem:[%s3 + $0xc] sm:$0xf]
    %v458 = vld [vmem:[%s3 + $0x10] sm:$0xf]
    %v459 = vld [vmem:[%s3 + $0x14] sm:$0xf]
    %v460 = vld [vmem:[%s3 + $0x18] sm:$0xf]
    %v461 = vld [vmem:[%s3 + $0x1c] sm:$0xf]
    %v462 = vld [vmem:[%s3 + $0x20] sm:$0xf]
    %v463 = vld [vmem:[%s3 + $0x24] sm:$0xf]
    %v464 = vld [vmem:[%s3 + $0x28] sm:$0xf]
    %v465 = vld [vmem:[%s3 + $0x2c] sm:$0xf]
    %v466 = vld [vmem:[%s3 + $0x30] sm:$0xf]
    %v467 = vld [vmem:[%s3 + $0x34] sm:$0xf]
    %v468 = vld [vmem:[%s3 + $0x38] sm:$0xf]
    %v469 = vld [vmem:[%s3 + $0x3c] sm:$0xf]
    %v470 = vpack.c.bf16 %v453, %v453
    %v487 = vunpack.c.l.b16 %v454
    %v488 = vunpack.c.l.b16 %v455
    %v489 = vunpack.c.l.b16 %v456
    %v490 = vunpack.c.l.b16 %v457
    %v491 = vunpack.c.l.b16 %v458
    %v492 = vunpack.c.l.b16 %v459
    %v493 = vunpack.c.l.b16 %v460
    %v494 = vunpack.c.l.b16 %v461
    %v495 = vunpack.c.l.b16 %v462
    %v496 = vunpack.c.l.b16 %v463
    %v497 = vunpack.c.l.b16 %v464
    %v498 = vunpack.c.l.b16 %v465
    %v499 = vunpack.c.l.b16 %v466
    %v500 = vunpack.c.l.b16 %v467
    %v501 = vunpack.c.l.b16 %v468
    %v502 = vunpack.c.l.b16 %v469
    %v503 = vpack.c.b16 %v488, %v487
    %v504 = vpack.c.b16 %v490, %v489
    %v505 = vpack.c.b16 %v492, %v491
    %v506 = vpack.c.b16 %v494, %v493
    %v507 = vpack.c.b16 %v496, %v495
    %v508 = vpack.c.b16 %v498, %v497
    %v509 = vpack.c.b16 %v500, %v499
    %v510 = vpack.c.b16 %v502, %v501
    %v512 = vsel %vm158, %v470, 0
    %v515 = vsel %vm158, %v503, 0
    %v518 = vsel %vm158, %v504, 0
    %v521 = vsel %vm158, %v505, 0
    %v524 = vsel %vm158, %v506, 0
    %v527 = vsel %vm158, %v507, 0
    %v530 = vsel %vm158, %v508, 0
    %v533 = vsel %vm158, %v509, 0
    %v536 = vsel %vm158, %v510, 0
    %538 = vmatprep.subr.bf16.mxu0 0
    %539 = vmatpush1.bf16.xpose.msra.mxu0 %v515
    %540 = vmatprep.subr.bf16.mxu0 0
    %541 = vmatpush1.bf16.xpose.msra.mxu0 %v518
    %542 = vmatprep.subr.bf16.mxu0 0
    %543 = vmatpush1.bf16.xpose.msra.mxu0 %v521
    %544 = vmatprep.subr.bf16.mxu0 0
    %545 = vmatpush1.bf16.xpose.msra.mxu0 %v524
    %546 = vmatprep.subr.bf16.mxu0 0
    %547 = vmatpush1.bf16.xpose.msra.mxu0 %v527
    %548 = vmatprep.subr.bf16.mxu0 0
    %549 = vmatpush1.bf16.xpose.msra.mxu0 %v530
    %550 = vmatprep.subr.bf16.mxu0 0
    %551 = vmatpush1.bf16.xpose.msra.mxu0 %v533
    %552 = vmatprep.subr.bf16.mxu0 0
    %553 = vmatpush1.bf16.xpose.msra.mxu0 %v536
    %554 = vmatprep.subr.bf16.mxu0 0
    %555 = vmatpush1.bf16.xpose.msra.mxu0 0
    %556 = vmatprep.subr.bf16.mxu0 0
    %557 = vmatpush1.bf16.xpose.msra.mxu0 0
    %558 = vmatprep.subr.bf16.mxu0 0
    %559 = vmatpush1.bf16.xpose.msra.mxu0 0
    %560 = vmatprep.subr.bf16.mxu0 0
    %561 = vmatpush1.bf16.xpose.msra.mxu0 0
    %562 = vmatprep.subr.bf16.mxu0 0
    %563 = vmatpush1.bf16.xpose.msra.mxu0 0
    %564 = vmatprep.subr.bf16.mxu0 0
    %565 = vmatpush1.bf16.xpose.msra.mxu0 0
    %566 = vmatprep.subr.bf16.mxu0 0
    %567 = vmatpush1.bf16.xpose.msra.mxu0 0
    %568 = vmatprep.subr.bf16.mxu0 0
    %569 = vmatpush1.bf16.xpose.msra.mxu0 0
    %570 = vmatprep.mubr.bf16.mxu0 0
    %571 = vmatmul.mubr.bf16.gmra.mrb[0].mxu0 %v512
    %v572 = vpop.f32.mrb[0].mxu0
    %v573 = vadd.f32 0.0, %v572
    %v574 = vpop.f32.mrb[0].mxu0
    %v575 = vpop.f32.mrb[0].mxu0
    %v576 = vpop.f32.mrb[0].mxu0
    %577 = vdwg.mxu0
    %v578 = vtanh.pop %v573
    %v579 = vpack.c.bf16 %v578, %v578
    %581 = vrot.lane.b32.xlu0 %v579, 64
    %v582 = vpop.permute.xlu0 %581
    %v584 = vsel %vm158, %v582, 0
    %v587 = vsel %vm158, %v579, 0
    %589 = vmatprep.subr.bf16.mxu0 0
    %590 = vmatpush1.bf16.xpose.msra.mxu0 %v587
    %591 = vmatprep.subr.bf16.mxu0 0
    %592 = vmatpush1.bf16.xpose.msra.mxu0 0
    %593 = vmatprep.subr.bf16.mxu0 0
    %594 = vmatpush1.bf16.xpose.msra.mxu0 0
    %595 = vmatprep.subr.bf16.mxu0 0
    %596 = vmatpush1.bf16.xpose.msra.mxu0 0
    %597 = vmatprep.subr.bf16.mxu0 0
    %598 = vmatpush1.bf16.xpose.msra.mxu0 0
    %599 = vmatprep.subr.bf16.mxu0 0
    %600 = vmatpush1.bf16.xpose.msra.mxu0 0
    %601 = vmatprep.subr.bf16.mxu0 0
    %602 = vmatpush1.bf16.xpose.msra.mxu0 0
    %603 = vmatprep.subr.bf16.mxu0 0
    %604 = vmatpush1.bf16.xpose.msra.mxu0 0
    %605 = vmatprep.subr.bf16.mxu0 0
    %606 = vmatpush1.bf16.xpose.msra.mxu0 0
    %607 = vmatprep.subr.bf16.mxu0 0
    %608 = vmatpush1.bf16.xpose.msra.mxu0 0
    %609 = vmatprep.subr.bf16.mxu0 0
    %610 = vmatpush1.bf16.xpose.msra.mxu0 0
    %611 = vmatprep.subr.bf16.mxu0 0
    %612 = vmatpush1.bf16.xpose.msra.mxu0 0
    %613 = vmatprep.subr.bf16.mxu0 0
    %614 = vmatpush1.bf16.xpose.msra.mxu0 0
    %615 = vmatprep.subr.bf16.mxu0 0
    %616 = vmatpush1.bf16.xpose.msra.mxu0 0
    %617 = vmatprep.subr.bf16.mxu0 0
    %618 = vmatpush1.bf16.xpose.msra.mxu0 0
    %619 = vmatprep.subr.bf16.mxu0 0
    %620 = vmatpush1.bf16.xpose.msra.mxu0 0
    %621 = vmatprep.mubr.bf16.mxu0 0
    %622 = vmatmul.mubr.bf16.gmra.mrb[0].mxu0 %v584
    %v623 = vpop.f32.mrb[0].mxu0
    %v624 = vadd.f32 0.0, %v623
    %v625 = vpop.f32.mrb[0].mxu0
    %v626 = vpop.f32.mrb[0].mxu0
    %v627 = vpop.f32.mrb[0].mxu0
    %628 = vdwg.mxu0
    %v629 = vmul.f32 %v624, 0.17677669
    %v630 = vmul.f32 %v629, 1.442695
    %v631 = vpow.pop %v630
    %v632 = vpack.c.bf16 %v631, %v631
    %v633 = vmul.bf16 %v632, %v26
    %v634 = vtanh.pop %v578
    %v635 = vpack.c.bf16 %v634, %v634
    %v637 = vsel %vm158, %v635, 1065369472
    %v639 = vsel %vm215, %v633, 0
    %v641 = vsel %vm219, %v637, 0
    %643 = vmatprep.subr.bf16.mxu0 0
    %644 = vmatpush1.bf16.msra.mxu0 %v641
    %645 = vmatprep.subr.bf16.mxu0 0
    %646 = vmatpush1.bf16.msra.mxu0 0
    %647 = vmatprep.subr.bf16.mxu0 0
    %648 = vmatpush1.bf16.msra.mxu0 0
    %649 = vmatprep.subr.bf16.mxu0 0
    %650 = vmatpush1.bf16.msra.mxu0 0
    %651 = vmatprep.subr.bf16.mxu0 0
    %652 = vmatpush1.bf16.msra.mxu0 0
    %653 = vmatprep.subr.bf16.mxu0 0
    %654 = vmatpush1.bf16.msra.mxu0 0
    %655 = vmatprep.subr.bf16.mxu0 0
    %656 = vmatpush1.bf16.msra.mxu0 0
    %657 = vmatprep.subr.bf16.mxu0 0
    %658 = vmatpush1.bf16.msra.mxu0 0
    %659 = vmatprep.subr.bf16.mxu0 0
    %660 = vmatpush1.bf16.msra.mxu0 0
    %661 = vmatprep.subr.bf16.mxu0 0
    %662 = vmatpush1.bf16.msra.mxu0 0
    %663 = vmatprep.subr.bf16.mxu0 0
    %664 = vmatpush1.bf16.msra.mxu0 0
    %665 = vmatprep.subr.bf16.mxu0 0
    %666 = vmatpush1.bf16.msra.mxu0 0
    %667 = vmatprep.subr.bf16.mxu0 0
    %668 = vmatpush1.bf16.msra.mxu0 0
    %669 = vmatprep.subr.bf16.mxu0 0
    %670 = vmatpush1.bf16.msra.mxu0 0
    %671 = vmatprep.subr.bf16.mxu0 0
    %672 = vmatpush1.bf16.msra.mxu0 0
    %673 = vmatprep.subr.bf16.mxu0 0
    %674 = vmatpush1.bf16.msra.mxu0 0
    %675 = vmatprep.mubr.bf16.mxu0 0
    %676 = vmatmul.mubr.bf16.gmra.mrb[0].mxu0 %v639
    %v677 = vpop.f32.mrb[0].mxu0
    %v678 = vadd.f32 0.0, %v677
    %v679 = vpop.f32.mrb[0].mxu0
    %v680 = vpop.f32.mrb[0].mxu0
    %v681 = vpop.f32.mrb[0].mxu0
    %682 = vdwg.mxu0
    %684 = vrot.lane.b32.xlu0 %v678, 96
    %v685 = vpop.permute.xlu0 %684
    %v687 = vsel %vm266, %v685, 0.0
    %688 = vadd.xlane.f32.xlu0 %v687
    %v689 = vpop.xlane.xlu0 %688
    %v690 = vrot.slane %v689, 4
    %v691 = vadd.f32 %v689, %v690
    %v692 = vrot.slane %v691, 2
    %v693 = vadd.f32 %v691, %v692
    %v694 = vrot.slane %v693, 1
    %v695 = vadd.f32 %v693, %v694
    %s696 = vtos %v695
    %v697 = vstv %s696
    %v698 = vmax.f32 %v697, 1e-30
    %v699 = vrcp.pop %v698
    %v700 = vmul.f32 %v678, %v699
    %v701 = vadd.f32 %v700, 0.0
    %702 = vrot.lane.b32.xlu0 %v579, 32
    %v703 = vpop.permute.xlu0 %702
    %704 = vrot.lane.b32.xlu0 %v579, 96
    %v705 = vpop.permute.xlu0 %704
    %v707 = vsel %vm158, %v703, 0
    %v710 = vsel %vm158, %v705, 0
    %712 = vmatprep.subr.bf16.mxu0 0
    %713 = vmatpush1.bf16.xpose.msra.mxu0 %v710
    %714 = vmatprep.subr.bf16.mxu0 0
    %715 = vmatpush1.bf16.xpose.msra.mxu0 0
    %716 = vmatprep.subr.bf16.mxu0 0
    %717 = vmatpush1.bf16.xpose.msra.mxu0 0
    %718 = vmatprep.subr.bf16.mxu0 0
    %719 = vmatpush1.bf16.xpose.msra.mxu0 0
    %720 = vmatprep.subr.bf16.mxu0 0
    %721 = vmatpush1.bf16.xpose.msra.mxu0 0
    %722 = vmatprep.subr.bf16.mxu0 0
    %723 = vmatpush1.bf16.xpose.msra.mxu0 0
    %724 = vmatprep.subr.bf16.mxu0 0
    %725 = vmatpush1.bf16.xpose.msra.mxu0 0
    %726 = vmatprep.subr.bf16.mxu0 0
    %727 = vmatpush1.bf16.xpose.msra.mxu0 0
    %728 = vmatprep.subr.bf16.mxu0 0
    %729 = vmatpush1.bf16.xpose.msra.mxu0 0
    %730 = vmatprep.subr.bf16.mxu0 0
    %731 = vmatpush1.bf16.xpose.msra.mxu0 0
    %732 = vmatprep.subr.bf16.mxu0 0
    %733 = vmatpush1.bf16.xpose.msra.mxu0 0
    %734 = vmatprep.subr.bf16.mxu0 0
    %735 = vmatpush1.bf16.xpose.msra.mxu0 0
    %736 = vmatprep.subr.bf16.mxu0 0
    %737 = vmatpush1.bf16.xpose.msra.mxu0 0
    %738 = vmatprep.subr.bf16.mxu0 0
    %739 = vmatpush1.bf16.xpose.msra.mxu0 0
    %740 = vmatprep.subr.bf16.mxu0 0
    %741 = vmatpush1.bf16.xpose.msra.mxu0 0
    %742 = vmatprep.subr.bf16.mxu0 0
    %743 = vmatpush1.bf16.xpose.msra.mxu0 0
    %744 = vmatprep.mubr.bf16.mxu0 0
    %745 = vmatmul.mubr.bf16.gmra.mrb[0].mxu0 %v707
    %v746 = vpop.f32.mrb[0].mxu0
    %v747 = vadd.f32 0.0, %v746
    %v748 = vpop.f32.mrb[0].mxu0
    %v749 = vpop.f32.mrb[0].mxu0
    %v750 = vpop.f32.mrb[0].mxu0
    %751 = vdwg.mxu0
    %v752 = vmul.f32 %v747, 0.17677669
    %v753 = vmul.f32 %v752, 1.442695
    %v754 = vpow.pop %v753
    %v755 = vpack.c.bf16 %v754, %v754
    %v756 = vmul.bf16 %v755, %v26
    %758 = vrot.lane.b32.xlu0 %v635, 96
    %v759 = vpop.permute.xlu0 %758
    %v761 = vsel %vm158, %v759, 1065369472
    %v763 = vsel %vm215, %v756, 0
    %v765 = vsel %vm219, %v761, 0
    %767 = vmatprep.subr.bf16.mxu0 0
    %768 = vmatpush1.bf16.msra.mxu0 %v765
    %769 = vmatprep.subr.bf16.mxu0 0
    %770 = vmatpush1.bf16.msra.mxu0 0
    %771 = vmatprep.subr.bf16.mxu0 0
    %772 = vmatpush1.bf16.msra.mxu0 0
    %773 = vmatprep.subr.bf16.mxu0 0
    %774 = vmatpush1.bf16.msra.mxu0 0
    %775 = vmatprep.subr.bf16.mxu0 0
    %776 = vmatpush1.bf16.msra.mxu0 0
    %777 = vmatprep.subr.bf16.mxu0 0
    %778 = vmatpush1.bf16.msra.mxu0 0
    %779 = vmatprep.subr.bf16.mxu0 0
    %780 = vmatpush1.bf16.msra.mxu0 0
    %781 = vmatprep.subr.bf16.mxu0 0
    %782 = vmatpush1.bf16.msra.mxu0 0
    %783 = vmatprep.subr.bf16.mxu0 0
    %784 = vmatpush1.bf16.msra.mxu0 0
    %785 = vmatprep.subr.bf16.mxu0 0
    %786 = vmatpush1.bf16.msra.mxu0 0
    %787 = vmatprep.subr.bf16.mxu0 0
    %788 = vmatpush1.bf16.msra.mxu0 0
    %789 = vmatprep.subr.bf16.mxu0 0
    %790 = vmatpush1.bf16.msra.mxu0 0
    %791 = vmatprep.subr.bf16.mxu0 0
    %792 = vmatpush1.bf16.msra.mxu0 0
    %793 = vmatprep.subr.bf16.mxu0 0
    %794 = vmatpush1.bf16.msra.mxu0 0
    %795 = vmatprep.subr.bf16.mxu0 0
    %796 = vmatpush1.bf16.msra.mxu0 0
    %797 = vmatprep.subr.bf16.mxu0 0
    %798 = vmatpush1.bf16.msra.mxu0 0
    %799 = vmatprep.mubr.bf16.mxu0 0
    %800 = vmatmul.mubr.bf16.gmra.mrb[0].mxu0 %v763
    %v801 = vpop.f32.mrb[0].mxu0
    %v802 = vadd.f32 0.0, %v801
    %v803 = vpop.f32.mrb[0].mxu0
    %v804 = vpop.f32.mrb[0].mxu0
    %v805 = vpop.f32.mrb[0].mxu0
    %806 = vdwg.mxu0
    %808 = vrot.lane.b32.xlu0 %v802, 96
    %v809 = vpop.permute.xlu0 %808
    %v811 = vsel %vm266, %v809, 0.0
    %812 = vadd.xlane.f32.xlu0 %v811
    %v813 = vpop.xlane.xlu0 %812
    %v814 = vrot.slane %v813, 4
    %v815 = vadd.f32 %v813, %v814
    %v816 = vrot.slane %v815, 2
    %v817 = vadd.f32 %v815, %v816
    %v818 = vrot.slane %v817, 1
    %v819 = vadd.f32 %v817, %v818
    %s820 = vtos %v819
    %v821 = vstv %s820
    %v822 = vmax.f32 %v821, 1e-30
    %v823 = vrcp.pop %v822
    %v824 = vmul.f32 %v802, %v823
    %v825 = vadd.f32 %v701, %v824
    %v826 = vpack.c.bf16 %v825, %v825
    %v828 = vsel %vm219, %v826, 0
    %830 = vmatprep.subr.bf16.mxu0 0
    %831 = vmatpush1.bf16.msra.mxu0 %v828
    %832 = vmatprep.subr.bf16.mxu0 0
    %833 = vmatpush1.bf16.msra.mxu0 0
    %834 = vmatprep.subr.bf16.mxu0 0
    %835 = vmatpush1.bf16.msra.mxu0 0
    %836 = vmatprep.subr.bf16.mxu0 0
    %837 = vmatpush1.bf16.msra.mxu0 0
    %838 = vmatprep.subr.bf16.mxu0 0
    %839 = vmatpush1.bf16.msra.mxu0 0
    %840 = vmatprep.subr.bf16.mxu0 0
    %841 = vmatpush1.bf16.msra.mxu0 0
    %842 = vmatprep.subr.bf16.mxu0 0
    %843 = vmatpush1.bf16.msra.mxu0 0
    %844 = vmatprep.subr.bf16.mxu0 0
    %845 = vmatpush1.bf16.msra.mxu0 0
    %846 = vmatprep.subr.bf16.mxu0 0
    %847 = vmatpush1.bf16.msra.mxu0 0
    %848 = vmatprep.subr.bf16.mxu0 0
    %849 = vmatpush1.bf16.msra.mxu0 0
    %850 = vmatprep.subr.bf16.mxu0 0
    %851 = vmatpush1.bf16.msra.mxu0 0
    %852 = vmatprep.subr.bf16.mxu0 0
    %853 = vmatpush1.bf16.msra.mxu0 0
    %854 = vmatprep.subr.bf16.mxu0 0
    %855 = vmatpush1.bf16.msra.mxu0 0
    %856 = vmatprep.subr.bf16.mxu0 0
    %857 = vmatpush1.bf16.msra.mxu0 0
    %858 = vmatprep.subr.bf16.mxu0 0
    %859 = vmatpush1.bf16.msra.mxu0 0
    %860 = vmatprep.subr.bf16.mxu0 0
    %861 = vmatpush1.bf16.msra.mxu0 0
    %862 = vmatprep.mubr.bf16.mxu0 0
    %863 = vmatmul.mubr.bf16.gmra.mrb[0].mxu0 %v408
    %v864 = vpop.f32.mrb[0].mxu0
    %v865 = vadd.f32 0.0, %v864
    %v866 = vpop.f32.mrb[0].mxu0
    %v867 = vpop.f32.mrb[0].mxu0
    %v868 = vpop.f32.mrb[0].mxu0
    %869 = vdwg.mxu0
    %v870 = vmul.f32 %v865, 0.5
    %v871 = vld [vmem:[%s4] sm:$0xf]
    %v872 = vld [vmem:[%s4 + $0x4] sm:$0xf]
    %v873 = vld [vmem:[%s4 + $0x8] sm:$0xf]
    %v874 = vld [vmem:[%s4 + $0xc] sm:$0xf]
    %v875 = vpack.c.bf16 %v870, %v870
    %v880 = vunpack.c.l.b16 %v871
    %v881 = vunpack.c.l.b16 %v872
    %v882 = vunpack.c.l.b16 %v873
    %v883 = vunpack.c.l.b16 %v874
    %v884 = vpack.c.b16 %v881, %v880
    %v885 = vpack.c.b16 %v883, %v882
    %v887 = vsel %vm158, %v875, 0
    %v890 = vsel %vm158, %v884, 0
    %v893 = vsel %vm158, %v885, 0
    %895 = vmatprep.subr.bf16.mxu0 0
    %896 = vmatpush1.bf16.xpose.msra.mxu0 %v890
    %897 = vmatprep.subr.bf16.mxu0 0
    %898 = vmatpush1.bf16.xpose.msra.mxu0 %v893
    %899 = vmatprep.subr.bf16.mxu0 0
    %900 = vmatpush1.bf16.xpose.msra.mxu0 0
    %901 = vmatprep.subr.bf16.mxu0 0
    %902 = vmatpush1.bf16.xpose.msra.mxu0 0
    %903 = vmatprep.subr.bf16.mxu0 0
    %904 = vmatpush1.bf16.xpose.msra.mxu0 0
    %905 = vmatprep.subr.bf16.mxu0 0
    %906 = vmatpush1.bf16.xpose.msra.mxu0 0
    %907 = vmatprep.subr.bf16.mxu0 0
    %908 = vmatpush1.bf16.xpose.msra.mxu0 0
    %909 = vmatprep.subr.bf16.mxu0 0
    %910 = vmatpush1.bf16.xpose.msra.mxu0 0
    %911 = vmatprep.subr.bf16.mxu0 0
    %912 = vmatpush1.bf16.xpose.msra.mxu0 0
    %913 = vmatprep.subr.bf16.mxu0 0
    %914 = vmatpush1.bf16.xpose.msra.mxu0 0
    %915 = vmatprep.subr.bf16.mxu0 0
    %916 = vmatpush1.bf16.xpose.msra.mxu0 0
    %917 = vmatprep.subr.bf16.mxu0 0
    %918 = vmatpush1.bf16.xpose.msra.mxu0 0
    %919 = vmatprep.subr.bf16.mxu0 0
    %920 = vmatpush1.bf16.xpose.msra.mxu0 0
    %921 = vmatprep.subr.bf16.mxu0 0
    %922 = vmatpush1.bf16.xpose.msra.mxu0 0
    %923 = vmatprep.subr.bf16.mxu0 0
    %924 = vmatpush1.bf16.xpose.msra.mxu0 0
    %925 = vmatprep.subr.bf16.mxu0 0
    %926 = vmatpush1.bf16.xpose.msra.mxu0 0
    %927 = vmatprep.mubr.bf16.mxu0 0
    %928 = vmatmul.mubr.bf16.gmra.mrb[0].mxu0 %v887
    %v929 = vpop.f32.mrb[0].mxu0
    %v930 = vadd.f32 0.0, %v929
    %v931 = vpop.f32.mrb[0].mxu0
    %v932 = vpop.f32.mrb[0].mxu0
    %v933 = vpop.f32.mrb[0].mxu0
    %934 = vdwg.mxu0
    %v935 = vtanh.pop %v930
    %v936 = vpack.c.bf16 %v935, %v935
    %938 = vrot.lane.b32.xlu0 %v936, 112
    %v939 = vpop.permute.xlu0 %938
    %v941 = vsel %vm85, %v939, 0
    %v944 = vsel %vm85, %v936, 0
    %946 = vmatprep.subr.bf16.mxu0 0
    %947 = vmatpush1.bf16.xpose.msra.mxu0 %v944
    %948 = vmatprep.subr.bf16.mxu0 0
    %949 = vmatpush1.bf16.xpose.msra.mxu0 0
    %950 = vmatprep.subr.bf16.mxu0 0
    %951 = vmatpush1.bf16.xpose.msra.mxu0 0
    %952 = vmatprep.subr.bf16.mxu0 0
    %953 = vmatpush1.bf16.xpose.msra.mxu0 0
    %954 = vmatprep.subr.bf16.mxu0 0
    %955 = vmatpush1.bf16.xpose.msra.mxu0 0
    %956 = vmatprep.subr.bf16.mxu0 0
    %957 = vmatpush1.bf16.xpose.msra.mxu0 0
    %958 = vmatprep.subr.bf16.mxu0 0
    %959 = vmatpush1.bf16.xpose.msra.mxu0 0
    %960 = vmatprep.subr.bf16.mxu0 0
    %961 = vmatpush1.bf16.xpose.msra.mxu0 0
    %962 = vmatprep.subr.bf16.mxu0 0
    %963 = vmatpush1.bf16.xpose.msra.mxu0 0
    %964 = vmatprep.subr.bf16.mxu0 0
    %965 = vmatpush1.bf16.xpose.msra.mxu0 0
    %966 = vmatprep.subr.bf16.mxu0 0
    %967 = vmatpush1.bf16.xpose.msra.mxu0 0
    %968 = vmatprep.subr.bf16.mxu0 0
    %969 = vmatpush1.bf16.xpose.msra.mxu0 0
    %970 = vmatprep.subr.bf16.mxu0 0
    %971 = vmatpush1.bf16.xpose.msra.mxu0 0
    %972 = vmatprep.subr.bf16.mxu0 0
    %973 = vmatpush1.bf16.xpose.msra.mxu0 0
    %974 = vmatprep.subr.bf16.mxu0 0
    %975 = vmatpush1.bf16.xpose.msra.mxu0 0
    %976 = vmatprep.subr.bf16.mxu0 0
    %977 = vmatpush1.bf16.xpose.msra.mxu0 0
    %978 = vmatprep.mubr.bf16.mxu0 0
    %979 = vmatmul.mubr.bf16.gmra.mrb[0].mxu0 %v941
    %v980 = vpop.f32.mrb[0].mxu0
    %v981 = vadd.f32 0.0, %v980
    %v982 = vpop.f32.mrb[0].mxu0
    %v983 = vpop.f32.mrb[0].mxu0
    %v984 = vpop.f32.mrb[0].mxu0
    %985 = vdwg.mxu0
    %v986 = vmul.f32 %v981, 0.25
    %v987 = vmul.f32 %v986, 1.442695
    %v988 = vpow.pop %v987
    %v989 = vpack.c.bf16 %v988, %v988
    %v990 = vmul.bf16 %v989, %v26
    %v991 = vsel %vm85, %v936, 1065369472
    %v993 = vsel %vm215, %v990, 0
    %v995 = vsel %vm219, %v991, 0
    %997 = vmatprep.subr.bf16.mxu0 0
    %998 = vmatpush1.bf16.msra.mxu0 %v995
    %999 = vmatprep.subr.bf16.mxu0 0
    %1000 = vmatpush1.bf16.msra.mxu0 0
    %1001 = vmatprep.subr.bf16.mxu0 0
    %1002 = vmatpush1.bf16.msra.mxu0 0
    %1003 = vmatprep.subr.bf16.mxu0 0
    %1004 = vmatpush1.bf16.msra.mxu0 0
    %1005 = vmatprep.subr.bf16.mxu0 0
    %1006 = vmatpush1.bf16.msra.mxu0 0
    %1007 = vmatprep.subr.bf16.mxu0 0
    %1008 = vmatpush1.bf16.msra.mxu0 0
    %1009 = vmatprep.subr.bf16.mxu0 0
    %1010 = vmatpush1.bf16.msra.mxu0 0
    %1011 = vmatprep.subr.bf16.mxu0 0
    %1012 = vmatpush1.bf16.msra.mxu0 0
    %1013 = vmatprep.subr.bf16.mxu0 0
    %1014 = vmatpush1.bf16.msra.mxu0 0
    %1015 = vmatprep.subr.bf16.mxu0 0
    %1016 = vmatpush1.bf16.msra.mxu0 0
    %1017 = vmatprep.subr.bf16.mxu0 0
    %1018 = vmatpush1.bf16.msra.mxu0 0
    %1019 = vmatprep.subr.bf16.mxu0 0
    %1020 = vmatpush1.bf16.msra.mxu0 0
    %1021 = vmatprep.subr.bf16.mxu0 0
    %1022 = vmatpush1.bf16.msra.mxu0 0
    %1023 = vmatprep.subr.bf16.mxu0 0
    %1024 = vmatpush1.bf16.msra.mxu0 0
    %1025 = vmatprep.subr.bf16.mxu0 0
    %1026 = vmatpush1.bf16.msra.mxu0 0
    %1027 = vmatprep.subr.bf16.mxu0 0
    %1028 = vmatpush1.bf16.msra.mxu0 0
    %1029 = vmatprep.mubr.bf16.mxu0 0
    %1030 = vmatmul.mubr.bf16.gmra.mrb[0].mxu0 %v993
    %v1031 = vpop.f32.mrb[0].mxu0
    %v1032 = vadd.f32 0.0, %v1031
    %v1033 = vpop.f32.mrb[0].mxu0
    %v1034 = vpop.f32.mrb[0].mxu0
    %v1035 = vpop.f32.mrb[0].mxu0
    %1036 = vdwg.mxu0
    %1038 = vrot.lane.b32.xlu0 %v1032, 112
    %v1039 = vpop.permute.xlu0 %1038
    %v1041 = vsel %vm266, %v1039, 0.0
    %1042 = vadd.xlane.f32.xlu0 %v1041
    %v1043 = vpop.xlane.xlu0 %1042
    %v1044 = vrot.slane %v1043, 4
    %v1045 = vadd.f32 %v1043, %v1044
    %v1046 = vrot.slane %v1045, 2
    %v1047 = vadd.f32 %v1045, %v1046
    %v1048 = vrot.slane %v1047, 1
    %v1049 = vadd.f32 %v1047, %v1048
    %s1050 = vtos %v1049
    %v1051 = vstv %s1050
    %v1052 = vmax.f32 %v1051, 1e-30
    %v1053 = vrcp.pop %v1052
    %v1054 = vmul.f32 %v1032, %v1053
    %v1055 = vadd.f32 %v1054, 0.0
    %v1056 = vpack.c.bf16 %v1055, %v1055
    %v1058 = vsel %vm219, %v1056, 0
    %1060 = vmatprep.subr.bf16.mxu0 0
    %1061 = vmatpush1.bf16.msra.mxu0 %v1058
    %1062 = vmatprep.subr.bf16.mxu0 0
    %1063 = vmatpush1.bf16.msra.mxu0 0
    %1064 = vmatprep.subr.bf16.mxu0 0
    %1065 = vmatpush1.bf16.msra.mxu0 0
    %1066 = vmatprep.subr.bf16.mxu0 0
    %1067 = vmatpush1.bf16.msra.mxu0 0
    %1068 = vmatprep.subr.bf16.mxu0 0
    %1069 = vmatpush1.bf16.msra.mxu0 0
    %1070 = vmatprep.subr.bf16.mxu0 0
    %1071 = vmatpush1.bf16.msra.mxu0 0
    %1072 = vmatprep.subr.bf16.mxu0 0
    %1073 = vmatpush1.bf16.msra.mxu0 0
    %1074 = vmatprep.subr.bf16.mxu0 0
    %1075 = vmatpush1.bf16.msra.mxu0 0
    %1076 = vmatprep.subr.bf16.mxu0 0
    %1077 = vmatpush1.bf16.msra.mxu0 0
    %1078 = vmatprep.subr.bf16.mxu0 0
    %1079 = vmatpush1.bf16.msra.mxu0 0
    %1080 = vmatprep.subr.bf16.mxu0 0
    %1081 = vmatpush1.bf16.msra.mxu0 0
    %1082 = vmatprep.subr.bf16.mxu0 0
    %1083 = vmatpush1.bf16.msra.mxu0 0
    %1084 = vmatprep.subr.bf16.mxu0 0
    %1085 = vmatpush1.bf16.msra.mxu0 0
    %1086 = vmatprep.subr.bf16.mxu0 0
    %1087 = vmatpush1.bf16.msra.mxu0 0
    %1088 = vmatprep.subr.bf16.mxu0 0
    %1089 = vmatpush1.bf16.msra.mxu0 0
    %1090 = vmatprep.subr.bf16.mxu0 0
    %1091 = vmatpush1.bf16.msra.mxu0 0
    %1092 = vmatprep.mubr.bf16.mxu0 0
    %1093 = vmatmul.mubr.bf16.gmra.mrb[0].mxu0 %v408
    %v1094 = vpop.f32.mrb[0].mxu0
    %v1095 = vadd.f32 0.0, %v1094
    %v1096 = vpop.f32.mrb[0].mxu0
    %v1097 = vpop.f32.mrb[0].mxu0
    %v1098 = vpop.f32.mrb[0].mxu0
    %1099 = vdwg.mxu0
    %v1100 = vsel %vm85, %v1095, 0.0
    %1101 = vst [vmem:[#allocation2] sm:$0xff] %v1100
    %v1102 = vpack.c.bf16 %v1095, %v1095
    %v1104 = vsel %vm85, %v1102, 0
    %1106 = vmatprep.subr.bf16.mxu0 0
    %1107 = vmatpush1.bf16.xpose.msra.mxu0 %v1104
    %1108 = vmatprep.subr.bf16.mxu0 0
    %1109 = vmatpush1.bf16.xpose.msra.mxu0 0
    %1110 = vmatprep.subr.bf16.mxu0 0
    %1111 = vmatpush1.bf16.xpose.msra.mxu0 0
    %1112 = vmatprep.subr.bf16.mxu0 0
    %1113 = vmatpush1.bf16.xpose.msra.mxu0 0
    %1114 = vmatprep.subr.bf16.mxu0 0
    %1115 = vmatpush1.bf16.xpose.msra.mxu0 0
    %1116 = vmatprep.subr.bf16.mxu0 0
    %1117 = vmatpush1.bf16.xpose.msra.mxu0 0
    %1118 = vmatprep.subr.bf16.mxu0 0
    %1119 = vmatpush1.bf16.xpose.msra.mxu0 0
    %1120 = vmatprep.subr.bf16.mxu0 0
    %1121 = vmatpush1.bf16.xpose.msra.mxu0 0
    %1122 = vmatprep.subr.bf16.mxu0 0
    %1123 = vmatpush1.bf16.xpose.msra.mxu0 0
    %1124 = vmatprep.subr.bf16.mxu0 0
    %1125 = vmatpush1.bf16.xpose.msra.mxu0 0
    %1126 = vmatprep.subr.bf16.mxu0 0
    %1127 = vmatpush1.bf16.xpose.msra.mxu0 0
    %1128 = vmatprep.subr.bf16.mxu0 0
    %1129 = vmatpush1.bf16.xpose.msra.mxu0 0
    %1130 = vmatprep.subr.bf16.mxu0 0
    %1131 = vmatpush1.bf16.xpose.msra.mxu0 0
    %1132 = vmatprep.subr.bf16.mxu0 0
    %1133 = vmatpush1.bf16.xpose.msra.mxu0 0
    %1134 = vmatprep.subr.bf16.mxu0 0
    %1135 = vmatpush1.bf16.xpose.msra.mxu0 0
    %1136 = vmatprep.subr.bf16.mxu0 0
    %1137 = vmatpush1.bf16.xpose.msra.mxu0 0
    %1138 = vmatprep.mubr.bf16.mxu0 0
    %1139 = vmatmul.mubr.bf16.gmra.mrb[0].mxu0 %v1104
    %v1140 = vpop.f32.mrb[0].mxu0
    %v1141 = vadd.f32 0.0, %v1140
    %v1142 = vpop.f32.mrb[0].mxu0
    %v1143 = vpop.f32.mrb[0].mxu0
    %v1144 = vpop.f32.mrb[0].mxu0
    %1145 = vdwg.mxu0
    %v1146 = vxor.u32 %v1141, 2147483648
    %v1147 = vmul.f32 %v1146, 1.442695
    %v1148 = vpow.pop %v1147
    %v1149 = vadd.f32 %v1148, 1.0
    %v1150 = vrcp.pop %v1149
    %v1151 = vmul.f32 1.0, %v1150
    %1152 = vst.msk [vmem:[#allocation4] sm:$0xff] %vm215, %v1151
    // Predicated region
    $region22: #{tpu_custom_call.1} parent=1 // pred_check
      _
    $region23: #{tpu_custom_call.1} parent=1 // pred_check_branch
      %1154 = sbr.rel (0) target = $region25
    $region24: #{tpu_custom_call.1} parent=1 // pred_region
      %s1156 = ssub.s32 128, 128
      %1157 = vsyncadd [#allocation3], %s1156
      %s1159 = sshll.u32 [#allocation2], 4
      %s1160 = int_to_ptr.vmem [resolvable:$true] %s1159
      %1162 = dma.vmem_to_hbm [thread:$0]  %s1160, 128, %s5, [#allocation3]
    $region25: #{tpu_custom_call.1} parent=1 // pred_fallthru
      _
    // Predicated region
    $region26: #{tpu_custom_call.1} parent=1 // pred_check
      _
    $region27: #{tpu_custom_call.1} parent=1 // pred_check_branch
      %1164 = sbr.rel (0) target = $region29
    $region28: #{tpu_custom_call.1} parent=1 // pred_region
      %s1166 = ssub.s32 128, 128
      %1167 = vsyncadd [#allocation5], %s1166
      %s1169 = sshll.u32 [#allocation4], 4
      %s1170 = int_to_ptr.vmem [resolvable:$true] %s1169
      %1172 = dma.vmem_to_hbm [thread:$0]  %s1170, 128, %s6, [#allocation5]
    $region29: #{tpu_custom_call.1} parent=1 // pred_fallthru
      _
    // Predicated region
    $region30: #{tpu_custom_call.1} parent=1 // pred_check
      _
    $region31: #{tpu_custom_call.1} parent=1 // pred_check_branch
      %1174 = sbr.rel (0) target = $region33
    $region32: #{tpu_custom_call.1} parent=1 // pred_region
      %1175 = dma.done [#allocation3], 128
    $region33: #{tpu_custom_call.1} parent=1 // pred_fallthru
      _
    // Predicated region
    $region34: #{tpu_custom_call.1} parent=1 // pred_check
      _
    $region35: #{tpu_custom_call.1} parent=1 // pred_check_branch
      %1177 = sbr.rel (0) target = $region37
    $region36: #{tpu_custom_call.1} parent=1 // pred_region
      %1178 = dma.done [#allocation5], 128
    $region37: #{tpu_custom_call.1} parent=1 // pred_fallthru
      _
    %1179 = vsyncpa [#allocation3], 1
    %1180 = vsyncpa [#allocation5], 1

</llo_original>
